<compile_context>
chip_gen: v7x
topology: tpu7x:2x2x1
jax: 0.10.0
libtpu: 0.0.40
codegen_flags: <defaults>
</compile_context>

<pallas_src>
import jax
import jax.numpy as jnp
from jax.experimental import pallas as pl
from jax.experimental.pallas import tpu as pltpu

LANE = 128          # TPU lane width; head feature dims are padded to this
EDGE_TILE = 256     # per-edge tile for K2/K3
K1_TM = 256         # K1 matmul output tile (rows == cols)
K1_TK = 512         # K1 reduction tile
K2_TK = 512         # K2 reduction tile
STRUCT_DIM = 5
BN_EPS = 1e-5


def _round_up(x, m):
    return ((x + m - 1) // m) * m


# ---------------- K1: exact-distance-2 indicator (tiled bf16 matmul) ---------
def _dist2_kernel(a_lhs_ref, a_rhs_ref, a_blk_ref, o_ref, acc_ref):
    # program_id only at kernel top level (inside pl.when it has no generic
    # lowering, which broke the previous version under the CPU interpreter).
    i = pl.program_id(0)
    j = pl.program_id(1)
    k = pl.program_id(2)
    last_k = pl.num_programs(2) - 1
    tm, tn = o_ref.shape

    @pl.when(k == 0)
    def _():
        acc_ref[...] = jnp.zeros_like(acc_ref)

    acc_ref[...] += jnp.dot(a_lhs_ref[...], a_rhs_ref[...],
                            preferred_element_type=jnp.float32)

    # Global off-diagonal mask (tiny VPU cost vs. the matmul).
    rows = jax.lax.broadcasted_iota(jnp.int32, (tm, tn), 0) + i * tm
    cols = jax.lax.broadcasted_iota(jnp.int32, (tm, tn), 1) + j * tn
    off_diag = rows != cols

    @pl.when(k == last_k)
    def _():
        reach2 = acc_ref[...] > 0.5                        # a length-2 path exists
        is_nbr = a_blk_ref[...].astype(jnp.float32) > 0.5  # distance-1 nodes
        a2 = jnp.where(reach2 & jnp.logical_not(is_nbr) & off_diag, 1.0, 0.0)
        o_ref[...] = a2.astype(o_ref.dtype)


def compute_dist2(adj_bf16):
    """A2[i, j] = 1 iff shortest-path distance(i, j) == 2 (0/1 values, bf16)."""
    n = adj_bf16.shape[0]                     # padded by the caller
    if n <= 256:
        tm = tn = tk = n                      # single block for tiny graphs
    else:
        tm = tn = K1_TM
        tk = K1_TK
    grid = (n // tm, n // tn, n // tk)
    return pl.pallas_call(
        _dist2_kernel,
        out_shape=jax.ShapeDtypeStruct((n, n), jnp.bfloat16),
        grid_spec=pltpu.PrefetchScalarGridSpec(
            num_scalar_prefetch=0,
            grid=grid,
            in_specs=[
                pl.BlockSpec((tm, tk), lambda i, j, k: (i, k)),   # A as lhs
                pl.BlockSpec((tk, tn), lambda i, j, k: (k, j)),   # A as rhs
                pl.BlockSpec((tm, tn), lambda i, j, k: (i, j)),   # A block for mask
            ],
            out_specs=pl.BlockSpec((tm, tn), lambda i, j, k: (i, j)),
            scratch_shapes=[pltpu.VMEM((tm, tn), jnp.float32)],
        ),
        compiler_params=pltpu.CompilerParams(
            dimension_semantics=("parallel", "parallel", "arbitrary")),
    )(adj_bf16, adj_bf16, adj_bf16)


# ---------------- K2: per-edge DE+ counts (reduce-at-finalize) ---------------
def _edge_counts_kernel(au_ref, av_ref, a2u_ref, a2v_ref, corr_ref, o_ref,
                        acc11_ref, acc12_ref, acc21_ref, acc22_ref):
    k = pl.program_id(1)
    last_k = pl.num_programs(1) - 1

    @pl.when(k == 0)
    def _():
        acc11_ref[...] = jnp.zeros_like(acc11_ref)
        acc12_ref[...] = jnp.zeros_like(acc12_ref)
        acc21_ref[...] = jnp.zeros_like(acc21_ref)
        acc22_ref[...] = jnp.zeros_like(acc22_ref)

    # Pure-VPU inner loop: bf16 products of 0/1 rows, f32 accumulation.
    au, av = au_ref[...], av_ref[...]
    a2u, a2v = a2u_ref[...], a2v_ref[...]
    acc11_ref[...] += (au * av).astype(jnp.float32)
    acc12_ref[...] += (au * a2v).astype(jnp.float32)
    acc21_ref[...] += (a2u * av).astype(jnp.float32)
    acc22_ref[...] += (a2u * a2v).astype(jnp.float32)

    @pl.when(k == last_k)
    def _():
        def rsum(ref):
            return jnp.sum(ref[...], axis=1, keepdims=True)       # (TE, 1)

        s11, s12 = rsum(acc11_ref), rsum(acc12_ref)
        s21, s22 = rsum(acc21_ref), rsum(acc22_ref)

        corr = corr_ref[...]                                      # (TE, 128)
        d1u, d1v = corr[:, 0:1], corr[:, 1:2]
        d2u, d2v = corr[:, 2:3], corr[:, 3:4]
        auv, avu = corr[:, 4:5], corr[:, 5:6]
        a2uv, a2vu = corr[:, 6:7], corr[:, 7:8]

        c11 = s11
        c12 = s12 + s21
        c1inf = (d1u - s11 - s12 - auv) + (d1v - s11 - s21 - avu)
        c22 = s22
        c2inf = (d2u - s21 - s22 - a2uv) + (d2v - s12 - s22 - a2vu)

        te, lanes = o_ref.shape
        lane = jax.lax.broadcasted_iota(jnp.int32, (te, lanes), 1)
        out = (jnp.where(lane == 0, c11, 0.0)
               + jnp.where(lane == 1, c12, 0.0)
               + jnp.where(lane == 2, c1inf, 0.0)
               + jnp.where(lane == 3, c22, 0.0)
               + jnp.where(lane == 4, c2inf, 0.0))
        o_ref[...] = out.astype(o_ref.dtype)


def edge_struct_counts(au, av, a2u, a2v, corr):
    """Returns an (E, 128) f32 slab with the 5 DE+ counts in lanes 0..4."""
    e, n = au.shape                           # both padded by the caller
    te = min(EDGE_TILE, e)
    tk = min(K2_TK, n)
    grid = (e // te, n // tk)
    row_spec = lambda: pl.BlockSpec((te, tk), lambda ei, ki: (ei, ki))
    return pl.pallas_call(
        _edge_counts_kernel,
        out_shape=jax.ShapeDtypeStruct((e, LANE), jnp.float32),
        grid_spec=pltpu.PrefetchScalarGridSpec(
            num_scalar_prefetch=0,
            grid=grid,
            in_specs=[row_spec(), row_spec(), row_spec(), row_spec(),
                      pl.BlockSpec((te, LANE), lambda ei, ki: (ei, 0))],
            out_specs=pl.BlockSpec((te, LANE), lambda ei, ki: (ei, 0)),
            scratch_shapes=[pltpu.VMEM((te, tk), jnp.float32)] * 4,
        ),
        compiler_params=pltpu.CompilerParams(
            dimension_semantics=("parallel", "arbitrary")),
    )(au, av, a2u, a2v, corr)


# ---------------- K3: fused lane-dense MLP head ------------------------------
def _head_kernel(xu_ref, xv_ref, cnt_ref, ws_ref, bs_ref, w1a_ref, w1b_ref,
                 b1_ref, w2_ref, b2_ref, w3_ref, b3_ref, o_ref):
    f32 = jnp.float32
    prod = xu_ref[...] * xv_ref[...]                                   # (TE, 128)
    # struct_encode: Linear(5,5) with eval-mode BatchNorm folded in, then ReLU.
    struct = jnp.maximum(
        jnp.dot(cnt_ref[...], ws_ref[...], preferred_element_type=f32)
        + bs_ref[...], 0.0)
    # lins[0] over concat([x_u * x_v, struct]) == split-weight sum (no concat).
    h = (jnp.dot(prod, w1a_ref[...], preferred_element_type=f32)
         + jnp.dot(struct, w1b_ref[...], preferred_element_type=f32)
         + b1_ref[...])
    h = jnp.maximum(h, 0.0)
    h = jnp.maximum(
        jnp.dot(h, w2_ref[...], preferred_element_type=f32) + b2_ref[...], 0.0)
    o_ref[...] = (jnp.dot(h, w3_ref[...], preferred_element_type=f32)
                  + b3_ref[...]).astype(o_ref.dtype)


def head_forward(xu, xv, counts_p, pp):
    e = xu.shape[0]                           # padded by the caller
    te = min(EDGE_TILE, e)
    grid = (e // te,)
    edge_spec = lambda: pl.BlockSpec((te, LANE), lambda ei: (ei, 0))
    full_spec = lambda a: pl.BlockSpec(a.shape, lambda ei: (0, 0))
    weights = (pp["ws_p"], pp["bs_p"], pp["w1a_p"], pp["w1b_p"], pp["b1_p"],
               pp["w2_p"], pp["b2_p"], pp["w3_p"], pp["b3_p"])
    return pl.pallas_call(
        _head_kernel,
        out_shape=jax.ShapeDtypeStruct((e, LANE), jnp.float32),
        grid_spec=pltpu.PrefetchScalarGridSpec(
            num_scalar_prefetch=0,
            grid=grid,
            in_specs=[edge_spec(), edge_spec(), edge_spec()]
                     + [full_spec(w) for w in weights],
            out_specs=pl.BlockSpec((te, LANE), lambda ei: (ei, 0)),
        ),
        compiler_params=pltpu.CompilerParams(dimension_semantics=("parallel",)),
    )(xu, xv, counts_p, *weights)


# ---------------- parameters -------------------------------------------------
def init_params(key, in_channels, hidden_channels):
    """Torch-default-style init for the layers used by the eval forward pass."""
    dense_dim = STRUCT_DIM + in_channels

    def linear(k, fin, fout):
        k1, k2 = jax.random.split(k)
        s = 1.0 / jnp.sqrt(jnp.float32(fin))
        return (jax.random.uniform(k1, (fin, fout), jnp.float32, -s, s),
                jax.random.uniform(k2, (fout,), jnp.float32, -s, s))

    ks = jax.random.split(key, 4)
    ws, bs = linear(ks[0], STRUCT_DIM, STRUCT_DIM)             # struct_encode
    w1, b1 = linear(ks[1], dense_dim, hidden_channels)         # lins[0]
    w2, b2 = linear(ks[2], hidden_channels, hidden_channels)   # lins[1]
    w3, b3 = linear(ks[3], hidden_channels, 1)                 # lins[2]
    return dict(
        ws=ws, bs=bs,
        bn_gamma=jnp.ones((STRUCT_DIM,), jnp.float32),
        bn_beta=jnp.zeros((STRUCT_DIM,), jnp.float32),
        bn_rm=jnp.zeros((STRUCT_DIM,), jnp.float32),
        bn_rv=jnp.ones((STRUCT_DIM,), jnp.float32),
        w1=w1, b1=b1, w2=w2, b2=b2, w3=w3, b3=b3)


def pad_params(p, in_channels, hidden_channels):
    """Fold eval-mode BatchNorm into struct_encode and zero-pad every weight to
    lane-dense 128-wide slabs (padded rows/cols are zero, so results are exact)."""
    assert in_channels <= LANE and hidden_channels <= LANE
    scale = p["bn_gamma"] / jnp.sqrt(p["bn_rv"] + BN_EPS)
    ws_f = p["ws"] * scale[None, :]
    bs_f = (p["bs"] - p["bn_rm"]) * scale + p["bn_beta"]

    def pad2(w, r, c):
        return jnp.zeros((LANE, LANE), jnp.float32).at[:r, :c].set(w)

    def pad1(b, c):
        return jnp.zeros((1, LANE), jnp.float32).at[0, :c].set(b)

    h = hidden_channels
    return dict(
        ws_p=pad2(ws_f, STRUCT_DIM, STRUCT_DIM),
        bs_p=pad1(bs_f, STRUCT_DIM),
        w1a_p=pad2(p["w1"][:in_channels], in_channels, h),
        w1b_p=pad2(p["w1"][in_channels:], STRUCT_DIM, h),
        b1_p=pad1(p["b1"], h),
        w2_p=pad2(p["w2"], h, h),
        b2_p=pad1(p["b2"], h),
        w3_p=pad2(p["w3"], h, 1),
        b3_p=pad1(p["b3"], 1),
    )


# ---------------- forward (Pallas) -------------------------------------------
def naive_node_labelling_forward(padded, x, adj, edges, in_channels):
    n = adj.shape[0]
    e = edges.shape[1]
    u = edges[0].astype(jnp.int32)
    v = edges[1].astype(jnp.int32)

    # Pad the node dimension so every tile divides exactly (zero rows/cols are
    # isolated nodes: they contribute nothing to distances, degrees or counts).
    np_ = _round_up(n, 128) if n <= 256 else _round_up(n, 512)
    adj_p = jnp.zeros((np_, np_), jnp.float32).at[:n, :n].set(
        adj.astype(jnp.float32))
    adj_bf = adj_p.astype(jnp.bfloat16)        # 0/1 adjacency: exact in bf16

    a2_bf = compute_dist2(adj_bf)              # exact-distance-2 indicator

    # Pad the edge dimension; dummy edges (node 0, node 0) are sliced off.
    ep = _round_up(e, EDGE_TILE)
    u_p = jnp.zeros((ep,), jnp.int32).at[:e].set(u)
    v_p = jnp.zeros((ep,), jnp.int32).at[:e].set(v)

    # Per-edge rows of A and A2 (wrapper-side gather; see in-kernel-gather TODO).
    au = jnp.take(adj_bf, u_p, axis=0)
    av = jnp.take(adj_bf, v_p, axis=0)
    a2u = jnp.take(a2_bf, u_p, axis=0)
    a2v = jnp.take(a2_bf, v_p, axis=0)

    # Endpoint-exclusion correction scalars (8 per edge) packed in lanes 0..7.
    d1 = jnp.sum(adj_p, axis=1)
    d2 = jnp.sum(a2_bf.astype(jnp.float32), axis=1)
    corr_cols = jnp.stack(
        [d1[u_p], d1[v_p], d2[u_p], d2[v_p],
         adj_p[u_p, v_p], adj_p[v_p, u_p],
         a2_bf[u_p, v_p].astype(jnp.float32),
         a2_bf[v_p, u_p].astype(jnp.float32)], axis=1)            # (ep, 8)
    corr = jnp.zeros((ep, LANE), jnp.float32).at[:, :8].set(corr_cols)

    # K2: DE+ counts, lane-packed and ready to feed the head directly.
    counts_p = edge_struct_counts(au, av, a2u, a2v, corr)         # (ep, 128)

    # Node embeddings, lane-padded and gathered per edge.
    x_p = jnp.zeros((n, LANE), jnp.float32).at[:, :in_channels].set(x)
    xu = jnp.take(x_p, u_p, axis=0)
    xv = jnp.take(x_p, v_p, axis=0)

    logit_p = head_forward(xu, xv, counts_p, padded)              # (ep, 128)
    return logit_p[:e, :1]


# ---------------- pure-JAX reference for correctness -------------------------
def naive_node_labelling_ref(p, x, adj, edges):
    n = adj.shape[0]
    reach2 = (adj @ adj) > 0.5
    a2 = jnp.where(reach2 & (adj < 0.5) & (jnp.eye(n) < 0.5), 1.0, 0.0)
    u, v = edges[0], edges[1]
    au, av, a2u, a2v = adj[u], adj[v], a2[u], a2[v]
    s11 = jnp.sum(au * av, axis=1)
    s12 = jnp.sum(au * a2v, axis=1)
    s21 = jnp.sum(a2u * av, axis=1)
    s22 = jnp.sum(a2u * a2v, axis=1)
    d1u, d1v, d2u, d2v = au.sum(1), av.sum(1), a2u.sum(1), a2v.sum(1)
    auv, avu, a2uv, a2vu = adj[u, v], adj[v, u], a2[u, v], a2[v, u]
    c11 = s11
    c12 = s12 + s21
    c1inf = (d1u - s11 - s12 - auv) + (d1v - s11 - s21 - avu)
    c22 = s22
    c2inf = (d2u - s21 - s22 - a2uv) + (d2v - s12 - s22 - a2vu)
    counts = jnp.stack([c11, c12, c1inf, c22, c2inf], axis=1)
    scale = p["bn_gamma"] / jnp.sqrt(p["bn_rv"] + BN_EPS)
    z = counts @ p["ws"] + p["bs"]
    z = (z - p["bn_rm"]) * scale + p["bn_beta"]
    struct = jnp.maximum(z, 0.0)
    feat = jnp.concatenate([x[u] * x[v], struct], axis=1)
    h = jnp.maximum(feat @ p["w1"] + p["b1"], 0.0)
    h = jnp.maximum(h @ p["w2"] + p["b2"], 0.0)
    return h @ p["w3"] + p["b3"]


if __name__ == "__main__":
    N = 512          # nodes (multiple of 512: no node padding needed)
    E = 512          # target edges
    IN_CH = 32       # node-embedding channels from the upstream GNN
    HIDDEN = 32      # hidden_channels
    # num_layers = 3 -> lins = [Linear(37, 32), Linear(32, 32), Linear(32, 1)]

    key = jax.random.PRNGKey(0)
    k_adj, k_x, k_e, k_p = jax.random.split(key, 4)

    # Symmetric 0/1 adjacency, no self loops.
    upper = (jax.random.uniform(k_adj, (N, N)) < 0.01).astype(jnp.float32)
    adj = jnp.clip(upper + upper.T, 0.0, 1.0) * (1.0 - jnp.eye(N, dtype=jnp.float32))

    x = jax.random.normal(k_x, (N, IN_CH), jnp.float32)
    edges = jax.random.randint(k_e, (2, E), 0, N)

    params = init_params(k_p, IN_CH, HIDDEN)
    padded = pad_params(params, IN_CH, HIDDEN)

    logit = jax.block_until_ready(
        naive_node_labelling_forward(padded, x, adj, edges, IN_CH))
    ref = jax.block_until_ready(naive_node_labelling_ref(params, x, adj, edges))

    assert logit.shape == (E, 1)
    err = float(jnp.max(jnp.abs(logit - ref)))
    scl = float(jnp.max(jnp.abs(ref))) + 1.0
    assert err / scl < 3e-3, f"max abs err {err} (scale {scl})"
    print("KERNEL_OK")
</pallas_src>

<mosaic_0001>
module attributes {stable_mosaic.version = 11 : i64} {
  func.func @_dist2_kernel(%arg0: i32, %arg1: i32, %arg2: i32, %arg3: memref<256x512xbf16, #tpu.memory_space<vmem>>, %arg4: memref<512x256xbf16, #tpu.memory_space<vmem>>, %arg5: memref<256x256xbf16, #tpu.memory_space<vmem>>, %arg6: memref<256x256xbf16, #tpu.memory_space<vmem>>, %arg7: memref<256x256xf32, #tpu.memory_space<vmem>>) attributes {dimension_semantics = [#tpu.dimension_semantics<parallel>, #tpu.dimension_semantics<parallel>, #tpu.dimension_semantics<arbitrary>], iteration_bounds = array<i64: 2, 2, 1>, scalar_prefetch = 0 : i64, scratch_operands = 1 : i64, tpu.core_type = #tpu.core_type<tc>, window_params = [{transform_indices = @transform_0, window_bounds = array<i64: 256, 512>}, {transform_indices = @transform_1, window_bounds = array<i64: 512, 256>}, {transform_indices = @transform_2, window_bounds = array<i64: 256, 256>}, {transform_indices = @transform_3, window_bounds = array<i64: 256, 256>}]} {
    %c0_i32 = arith.constant 0 : i32
    %0 = arith.cmpi eq, %arg2, %c0_i32 : i32
    %1 = arith.extui %0 : i1 to i32
    %c0_i32_0 = arith.constant 0 : i32
    %2 = arith.cmpi ne, %1, %c0_i32_0 : i32
    scf.if %2 {
      %cst_11 = arith.constant 0.000000e+00 : f32
      %21 = vector.broadcast %cst_11 : f32 to vector<256x256xf32>
      %c0_12 = arith.constant 0 : index
      %c0_13 = arith.constant 0 : index
      %22 = vector.load %arg7[%c0_12, %c0_13] : memref<256x256xf32, #tpu.memory_space<vmem>>, vector<256x256xf32>
      tpu.vector_store %arg7[%c0_12, %c0_13], %21 {strides = array<i32>} : memref<256x256xf32, #tpu.memory_space<vmem>>, vector<256x256xf32>,
    } else {
    }
    %c0 = arith.constant 0 : index
    %c0_1 = arith.constant 0 : index
    %3 = vector.load %arg7[%c0, %c0_1] : memref<256x256xf32, #tpu.memory_space<vmem>>, vector<256x256xf32>
    %c0_2 = arith.constant 0 : index
    %c0_3 = arith.constant 0 : index
    %4 = vector.load %arg3[%c0_2, %c0_3] : memref<256x512xbf16, #tpu.memory_space<vmem>>, vector<256x512xbf16>
    %c0_4 = arith.constant 0 : index
    %c0_5 = arith.constant 0 : index
    %5 = vector.load %arg4[%c0_4, %c0_5] : memref<512x256xbf16, #tpu.memory_space<vmem>>, vector<512x256xbf16>
    %cst = arith.constant dense<0.000000e+00> : vector<256x256xf32>
    %6 = tpu.matmul %4, %5, %cst {dimension_numbers = #tpu.dot_dimension_numbers<[1], [0], [0], [1], [0, 0, 1, 1], [], []>} : vector<256x512xbf16>, vector<512x256xbf16>, vector<256x256xf32> -> vector<256x256xf32>
    %7 = arith.addf %3, %6 : vector<256x256xf32>
    %c0_6 = arith.constant 0 : index
    %c0_7 = arith.constant 0 : index
    %8 = vector.load %arg7[%c0_6, %c0_7] : memref<256x256xf32, #tpu.memory_space<vmem>>, vector<256x256xf32>
    tpu.vector_store %arg7[%c0_6, %c0_7], %7 {strides = array<i32>} : memref<256x256xf32, #tpu.memory_space<vmem>>, vector<256x256xf32>,
    %9 = tpu.iota {dimensions = array<i32: 0>} : vector<256x256xi32>
    %c256_i32 = arith.constant 256 : i32
    %10 = arith.muli %arg0, %c256_i32 : i32
    %11 = vector.broadcast %10 : i32 to vector<256x256xi32>
    %12 = arith.addi %9, %11 : vector<256x256xi32>
    %13 = tpu.iota {dimensions = array<i32: 1>} : vector<256x256xi32>
    %c256_i32_8 = arith.constant 256 : i32
    %14 = arith.muli %arg1, %c256_i32_8 : i32
    %15 = vector.broadcast %14 : i32 to vector<256x256xi32>
    %16 = arith.addi %13, %15 : vector<256x256xi32>
    %17 = arith.cmpi ne, %12, %16 : vector<256x256xi32>
    %c0_i32_9 = arith.constant 0 : i32
    %18 = arith.cmpi eq, %arg2, %c0_i32_9 : i32
    %19 = arith.extui %18 : i1 to i32
    %c0_i32_10 = arith.constant 0 : i32
    %20 = arith.cmpi ne, %19, %c0_i32_10 : i32
    scf.if %20 {
      %c0_11 = arith.constant 0 : index
      %c0_12 = arith.constant 0 : index
      %21 = vector.load %arg7[%c0_11, %c0_12] : memref<256x256xf32, #tpu.memory_space<vmem>>, vector<256x256xf32>
      %cst_13 = arith.constant 5.000000e-01 : f32
      %22 = vector.broadcast %cst_13 : f32 to vector<256x256xf32>
      %23 = arith.cmpf ogt, %21, %22 : vector<256x256xf32>
      %c0_14 = arith.constant 0 : index
      %c0_15 = arith.constant 0 : index
      %24 = vector.load %arg5[%c0_14, %c0_15] : memref<256x256xbf16, #tpu.memory_space<vmem>>, vector<256x256xbf16>
      %25 = arith.extf %24 : vector<256x256xbf16> to vector<256x256xf32>
      %cst_16 = arith.constant 5.000000e-01 : f32
      %26 = vector.broadcast %cst_16 : f32 to vector<256x256xf32>
      %27 = arith.cmpf ogt, %25, %26 : vector<256x256xf32>
      %cst_17 = arith.constant dense<true> : vector<256x256xi1>
      %28 = arith.xori %27, %cst_17 : vector<256x256xi1>
      %29 = arith.andi %23, %28 : vector<256x256xi1>
      %30 = arith.andi %29, %17 : vector<256x256xi1>
      %cst_18 = arith.constant 1.000000e+00 : f32
      %cst_19 = arith.constant 0.000000e+00 : f32
      %31 = vector.broadcast %cst_18 : f32 to vector<256x256xf32>
      %32 = vector.broadcast %cst_19 : f32 to vector<256x256xf32>
      %33 = arith.select %30, %31, %32 : vector<256x256xi1>, vector<256x256xf32>
      %34 = arith.truncf %33 : vector<256x256xf32> to vector<256x256xbf16>
      %c0_20 = arith.constant 0 : index
      %c0_21 = arith.constant 0 : index
      %35 = vector.load %arg6[%c0_20, %c0_21] : memref<256x256xbf16, #tpu.memory_space<vmem>>, vector<256x256xbf16>
      tpu.vector_store %arg6[%c0_20, %c0_21], %34 {strides = array<i32>} : memref<256x256xbf16, #tpu.memory_space<vmem>>, vector<256x256xbf16>,
    } else {
    }
    return
  }
  func.func @transform_0(%arg0: i32, %arg1: i32, %arg2: i32) -> (i32, i32) {
    %c0_i32 = arith.constant 0 : i32
    return %arg0, %arg2 : i32, i32
  }
  func.func @transform_1(%arg0: i32, %arg1: i32, %arg2: i32) -> (i32, i32) {
    %c0_i32 = arith.constant 0 : i32
    return %arg2, %arg1 : i32, i32
  }
  func.func @transform_2(%arg0: i32, %arg1: i32, %arg2: i32) -> (i32, i32) {
    %c0_i32 = arith.constant 0 : i32
    return %arg0, %arg1 : i32, i32
  }
  func.func @transform_3(%arg0: i32, %arg1: i32, %arg2: i32) -> (i32, i32) {
    %c0_i32 = arith.constant 0 : i32
    return %arg0, %arg1 : i32, i32
  }
}

</mosaic_0001>

<llo_original>
// kernel: tpu_custom_call.1
$region0: #{tpu_custom_call.1}
  #allocation0 [shape = 'u32[]', space=smem, size = 0x4, offset = 0x4, fixed_abs, tag = 'smem constant byte address 0x4 - core index']
  #allocation1 [shape = 'u32[144,128]{1,0:T(1,128)}', space=vmem, size = 0x12000, scoped, tag = 'internal scratch']
  #allocation2 [shape = 'f32[256,256]{1,0:T(8,128)}', space=vmem, size = 0x40000, scoped, tag = 'scratch operand']
  %s0 = inlined_call_operand.hbm [shape: bf16[512,512], index: 0, kind: input, shape index: {}]
  %s1 = inlined_call_operand.hbm [shape: bf16[512,512], index: 1, kind: input, shape index: {}]
  %s2 = inlined_call_operand.hbm [shape: bf16[512,512], index: 2, kind: input, shape index: {}]
  %s3 = inlined_call_operand.hbm [shape: bf16[512,512], index: 3, kind: output, shape index: {}]
  %s4 = sld [smem:[#allocation0]]
  $region65: #{tpu_custom_call.1} parent=0
    _
  %s6 = ssub.s32 1, %s4
  %s7 = scalar_select 0, %s6, %s4
  $region1: #{tpu_custom_call.1} parent=0
    #allocation3 [shape = 'u8[524288]{0}', space=vmem, size = 0x80000, scoped, tag = 'input window, operand 0']
    #allocation4 [shape = 's32[2]{0}', space=sflag, size = 0x8, scoped, tag = 'scoped memory for tpu_custom_call.1']
    #allocation5 [shape = 's32[2]{0}', space=sflag, size = 0x8, scoped, tag = 'scoped memory for tpu_custom_call.1']
    #allocation6 [shape = 'u8[524288]{0}', space=vmem, size = 0x80000, scoped, tag = 'input window, operand 1']
    #allocation7 [shape = 's32[2]{0}', space=sflag, size = 0x8, scoped, tag = 'scoped memory for tpu_custom_call.1']
    #allocation8 [shape = 'u8[262144]{0}', space=vmem, size = 0x40000, scoped, tag = 'input window, operand 2']
    #allocation9 [shape = 'u8[262144]{0}', space=vmem, size = 0x40000, scoped, tag = 'output window, operand 0']
    %8 = vsyncpa [#allocation4], 0
    %s9 = scalar_lea.sflag [#allocation4], 1
    %10 = vsyncpa %s9, 0
    %11 = vsyncpa [#allocation7], 0
    %s12 = scalar_lea.sflag [#allocation7], 1
    %13 = vsyncpa %s12, 0
    %14 = vsyncpa [#allocation5], 0
    %s15 = scalar_lea.sflag [#allocation5], 1
    %16 = vsyncpa %s15, 0
    loop: start=0, step=1, limit=6
    $region2: #{tpu_custom_call.1} parent=1 // loop_pre_header
      _
    $region3: #{tpu_custom_call.1} parent=1 // loop_header
      %s18 = sphi 0, %s22
      %p19 = scmp.ge.s32.totalorder %s18, 6
      %s25 = sphi 0, %s44
      %s26 = sphi 0, %s40
      %s27 = sphi 0, %s36
      %s28 = sphi 0, %s25
      %s29 = sphi 0, %s26
      %s30 = sphi 0, %s27
      %s31 = sphi 0, %s28
      %s32 = sphi 0, %s29
      %s33 = sphi 0, %s30
      %s49 = sphi 0, %s51
      %s52 = sphi 0, %s49
      %s53 = sphi 0, %s52
      %s69 = sphi 0, %s53
      %s77 = sphi 0, %s79
      %s80 = sphi 0, %s77
      %s81 = sphi 0, %s80
      %s97 = sphi 0, %s81
      %s105 = sphi 0, %s107
      %s108 = sphi 0, %s105
      %s109 = sphi 0, %s108
      %s125 = sphi 0, %s109
      %s133 = sphi 0, %s135
      %s136 = sphi 0, %s133
      %s137 = sphi 0, %s136
      %s153 = sphi 0, %s137
    $region4: #{tpu_custom_call.1} parent=1 // loop_header_branch
      %21 = sbr.rel (%p19) target = $region8
    $region5: #{tpu_custom_call.1} parent=1 // loop_body
      %s23 = ssub.s32 %s18, 1
      %s24 = ssub.s32 %s18, 2
      %s34 = sadd.s32 1, %s27
      %p35 = scmp.ge.s32.totalorder %s34, 1
      %s36 = scalar_select %p35, 0, %s34
      %s37 = sadd.s32 1, %s26
      %s38 = scalar_select %p35, %s37, %s26
      %p39 = scmp.ge.s32.totalorder %s38, 2
      %s40 = scalar_select %p39, 0, %s38
      %s41 = sadd.s32 1, %s25
      %s42 = scalar_select %p39, %s41, %s25
      %p43 = scmp.ge.s32.totalorder %s42, 2
      %s44 = scalar_select %p43, 0, %s42
      %s45 = ssub.s32 %s25, %s44
      %s46 = ssub.s32 %s27, %s36
      %s47 = sor.u32 %s45, %s46
      %p48 = scmp.eq.s32.totalorder %s47, 0
      %s50 = sadd.s32 %s49, 1
      %s51 = scalar_select %p48, %s49, %s50
      %p54 = pneg %p48
      %p55 = scmp.eq.s32.totalorder %s18, 3
      %p56 = por %p54, %p55
      %p57 = scmp.ne.s32.totalorder %s49, %s52
      %p58 = scmp.eq.s32.totalorder %s18, 0
      %p59 = por %p57, %p58
      %p60 = scmp.ne.s32.totalorder %s49, %s52
      %p61 = scmp.eq.s32.totalorder %s23, 3
      %p62 = por %p60, %p61
      %p63 = scmp.ne.s32.totalorder %s52, %s53
      %p64 = scmp.eq.s32.totalorder %s23, 0
      %p65 = por %p63, %p64
      %p66 = scmp.ne.s32.totalorder %s52, %s53
      %p67 = scmp.eq.s32.totalorder %s24, 3
      %p68 = por %p66, %p67
      %p70 = scmp.ne.s32.totalorder %s53, %s69
      %p71 = scmp.eq.s32.totalorder %s24, 0
      %p72 = por %p70, %p71
      %s73 = ssub.s32 %s27, %s36
      %s74 = ssub.s32 %s26, %s40
      %s75 = sor.u32 %s73, %s74
      %p76 = scmp.eq.s32.totalorder %s75, 0
      %s78 = sadd.s32 %s77, 1
      %s79 = scalar_select %p76, %s77, %s78
      %p82 = pneg %p76
      %p83 = scmp.eq.s32.totalorder %s18, 3
      %p84 = por %p82, %p83
      %p85 = scmp.ne.s32.totalorder %s77, %s80
      %p86 = scmp.eq.s32.totalorder %s18, 0
      %p87 = por %p85, %p86
      %p88 = scmp.ne.s32.totalorder %s77, %s80
      %p89 = scmp.eq.s32.totalorder %s23, 3
      %p90 = por %p88, %p89
      %p91 = scmp.ne.s32.totalorder %s80, %s81
      %p92 = scmp.eq.s32.totalorder %s23, 0
      %p93 = por %p91, %p92
      %p94 = scmp.ne.s32.totalorder %s80, %s81
      %p95 = scmp.eq.s32.totalorder %s24, 3
      %p96 = por %p94, %p95
      %p98 = scmp.ne.s32.totalorder %s81, %s97
      %p99 = scmp.eq.s32.totalorder %s24, 0
      %p100 = por %p98, %p99
      %s101 = ssub.s32 %s25, %s44
      %s102 = ssub.s32 %s26, %s40
      %s103 = sor.u32 %s101, %s102
      %p104 = scmp.eq.s32.totalorder %s103, 0
      %s106 = sadd.s32 %s105, 1
      %s107 = scalar_select %p104, %s105, %s106
      %p110 = pneg %p104
      %p111 = scmp.eq.s32.totalorder %s18, 3
      %p112 = por %p110, %p111
      %p113 = scmp.ne.s32.totalorder %s105, %s108
      %p114 = scmp.eq.s32.totalorder %s18, 0
      %p115 = por %p113, %p114
      %p116 = scmp.ne.s32.totalorder %s105, %s108
      %p117 = scmp.eq.s32.totalorder %s23, 3
      %p118 = por %p116, %p117
      %p119 = scmp.ne.s32.totalorder %s108, %s109
      %p120 = scmp.eq.s32.totalorder %s23, 0
      %p121 = por %p119, %p120
      %p122 = scmp.ne.s32.totalorder %s108, %s109
      %p123 = scmp.eq.s32.totalorder %s24, 3
      %p124 = por %p122, %p123
      %p126 = scmp.ne.s32.totalorder %s109, %s125
      %p127 = scmp.eq.s32.totalorder %s24, 0
      %p128 = por %p126, %p127
      %s129 = ssub.s32 %s25, %s44
      %s130 = ssub.s32 %s26, %s40
      %s131 = sor.u32 %s129, %s130
      %p132 = scmp.eq.s32.totalorder %s131, 0
      %s134 = sadd.s32 %s133, 1
      %s135 = scalar_select %p132, %s133, %s134
      %p138 = pneg %p132
      %p139 = scmp.eq.s32.totalorder %s18, 3
      %p140 = por %p138, %p139
      %p141 = scmp.ne.s32.totalorder %s133, %s136
      %p142 = scmp.eq.s32.totalorder %s18, 0
      %p143 = por %p141, %p142
      %p144 = scmp.ne.s32.totalorder %s133, %s136
      %p145 = scmp.eq.s32.totalorder %s23, 3
      %p146 = por %p144, %p145
      %p147 = scmp.ne.s32.totalorder %s136, %s137
      %p148 = scmp.eq.s32.totalorder %s23, 0
      %p149 = por %p147, %p148
      %p150 = scmp.ne.s32.totalorder %s136, %s137
      %p151 = scmp.eq.s32.totalorder %s24, 3
      %p152 = por %p150, %p151
      %p154 = scmp.ne.s32.totalorder %s137, %s153
      %p155 = scmp.eq.s32.totalorder %s24, 0
      %p156 = por %p154, %p155
      %p157 = scmp.le.s32.totalorder 1, %s18
      %p158 = scmp.lt.s32.totalorder %s18, 5
      %p159 = pnand %p157, %p158
      %p160 = pneg %p159
      // Predicated region
      $region9: #{tpu_custom_call.1} parent=5 // pred_check
        _
      $region10: #{tpu_custom_call.1} parent=5 // pred_check_branch
        %162 = sbr.rel (%p159) target = $region12
      $region11: #{tpu_custom_call.1} parent=5 // pred_region
        %s163 = ssub.s32 %s18, 1
      $region12: #{tpu_custom_call.1} parent=5 // pred_fallthru
        _
      %p164 = scmp.lt.s32.totalorder %s18, 4
      // Predicated region
      $region13: #{tpu_custom_call.1} parent=5 // pred_check
        %p165 = pneg %p164
      $region14: #{tpu_custom_call.1} parent=5 // pred_check_branch
        %167 = sbr.rel (%p165) target = $region16
      $region15: #{tpu_custom_call.1} parent=5 // pred_region
        // Predicated region
        $region17: #{tpu_custom_call.1} parent=15 // pred_check
          %p168 = pneg %p59
        $region18: #{tpu_custom_call.1} parent=15 // pred_check_branch
          %170 = sbr.rel (%p168) target = $region20
        $region19: #{tpu_custom_call.1} parent=15 // pred_region
          %s171 = sand.u32 %s49, 1
          %s172 = scalar_lea.sflag [#allocation4], %s171
          %s173 = sand.u32 %s49, 1
          %s174 = smul.addr %s173, 512
          %s175 = scalar_lea.vmem [#allocation3], %s174
          %s176 = smul.u32 32, %s25
          %s177 = smul.u32 4, %s27
          %s179 = ssub.s32 8192, 8192
          %180 = vsyncadd %s172, %s179
          %s181 = smul.addr %s176, 4
          %s182 = sadd.s32 %s177, %s181
          %s183 = smul.addr %s182, 64
          %s184 = scalar_lea.hbm %s0, %s183
          %s185 = sshll.u32 %s175, 4
          %s186 = int_to_ptr.vmem [resolvable:$true] %s185
          %191 = dma.hbm_to_vmem [thread:$0]  %s184, 8192, %s186, %s172, 256, 256, 16
        $region20: #{tpu_custom_call.1} parent=15 // pred_fallthru
          _
        // Predicated region
        $region21: #{tpu_custom_call.1} parent=15 // pred_check
          %p192 = pneg %p87
        $region22: #{tpu_custom_call.1} parent=15 // pred_check_branch
          %194 = sbr.rel (%p192) target = $region24
        $region23: #{tpu_custom_call.1} parent=15 // pred_region
          %s195 = sand.u32 %s18, 1
          %s196 = scalar_lea.sflag [#allocation7], %s195
          %s197 = sand.u32 %s77, 1
          %s198 = smul.addr %s197, 512
          %s199 = scalar_lea.vmem [#allocation6], %s198
          %s200 = smul.u32 64, %s27
          %s201 = smul.u32 2, %s26
          %s203 = ssub.s32 8192, 8192
          %204 = vsyncadd %s196, %s203
          %s205 = smul.addr %s200, 4
          %s206 = sadd.s32 %s201, %s205
          %s207 = smul.addr %s206, 64
          %s208 = scalar_lea.hbm %s1, %s207
          %s209 = sshll.u32 %s199, 4
          %s210 = int_to_ptr.vmem [resolvable:$true] %s209
          %215 = dma.hbm_to_vmem [thread:$0]  %s208, 8192, %s210, %s196, 256, 128, 8
        $region24: #{tpu_custom_call.1} parent=15 // pred_fallthru
          _
        // Predicated region
        $region25: #{tpu_custom_call.1} parent=15 // pred_check
          %p216 = pneg %p115
        $region26: #{tpu_custom_call.1} parent=15 // pred_check_branch
          %218 = sbr.rel (%p216) target = $region28
        $region27: #{tpu_custom_call.1} parent=15 // pred_region
          %s219 = sand.u32 %s18, 1
          %s220 = scalar_lea.sflag [#allocation7], %s219
          %s221 = sand.u32 %s105, 1
          %s222 = smul.addr %s221, 256
          %s223 = scalar_lea.vmem [#allocation8], %s222
          %s224 = smul.u32 32, %s25
          %s225 = smul.u32 2, %s26
          %s227 = ssub.s32 4096, 4096
          %228 = vsyncadd %s220, %s227
          %s229 = smul.addr %s224, 4
          %s230 = sadd.s32 %s225, %s229
          %s231 = smul.addr %s230, 64
          %s232 = scalar_lea.hbm %s2, %s231
          %s233 = sshll.u32 %s223, 4
          %s234 = int_to_ptr.vmem [resolvable:$true] %s233
          %239 = dma.hbm_to_vmem [thread:$0]  %s232, 4096, %s234, %s220, 256, 128, 8
        $region28: #{tpu_custom_call.1} parent=15 // pred_fallthru
          _
      $region16: #{tpu_custom_call.1} parent=5 // pred_fallthru
        _
      %p240 = scmp.le.s32.totalorder 1, %s18
      %p241 = scmp.lt.s32.totalorder %s18, 5
      %p242 = pnand %p240, %p241
      %p243 = pneg %p242
      // Predicated region
      $region29: #{tpu_custom_call.1} parent=5 // pred_check
        _
      $region30: #{tpu_custom_call.1} parent=5 // pred_check_branch
        %245 = sbr.rel (%p242) target = $region32
      $region31: #{tpu_custom_call.1} parent=5 // pred_region
        %s246 = ssub.s32 %s18, 1
        %s247 = sand.u32 %s52, 1
        %s248 = scalar_lea.sflag [#allocation4], %s247
        %s249 = sand.u32 %s52, 1
        %s250 = smul.addr %s249, 512
        %s251 = scalar_lea.vmem [#allocation3], %s250
        // Predicated region
        $region33: #{tpu_custom_call.1} parent=31 // pred_check
          %p252 = pneg %p65
        $region34: #{tpu_custom_call.1} parent=31 // pred_check_branch
          %254 = sbr.rel (%p252) target = $region36
        $region35: #{tpu_custom_call.1} parent=31 // pred_region
          %255 = dma.done %s248, 8192
        $region36: #{tpu_custom_call.1} parent=31 // pred_fallthru
          _
        %s256 = sand.u32 %s23, 1
        %s257 = scalar_lea.sflag [#allocation7], %s256
        %s258 = sand.u32 %s80, 1
        %s259 = smul.addr %s258, 512
        %s260 = scalar_lea.vmem [#allocation6], %s259
        // Predicated region
        $region37: #{tpu_custom_call.1} parent=31 // pred_check
          %p261 = pneg %p93
        $region38: #{tpu_custom_call.1} parent=31 // pred_check_branch
          %263 = sbr.rel (%p261) target = $region40
        $region39: #{tpu_custom_call.1} parent=31 // pred_region
          %264 = dma.done %s257, 8192
        $region40: #{tpu_custom_call.1} parent=31 // pred_fallthru
          _
        %s265 = sand.u32 %s23, 1
        %s266 = scalar_lea.sflag [#allocation7], %s265
        %s267 = sand.u32 %s108, 1
        %s268 = smul.addr %s267, 256
        %s269 = scalar_lea.vmem [#allocation8], %s268
        // Predicated region
        $region41: #{tpu_custom_call.1} parent=31 // pred_check
          %p270 = pneg %p121
        $region42: #{tpu_custom_call.1} parent=31 // pred_check_branch
          %272 = sbr.rel (%p270) target = $region44
        $region43: #{tpu_custom_call.1} parent=31 // pred_region
          %273 = dma.done %s266, 4096
        $region44: #{tpu_custom_call.1} parent=31 // pred_fallthru
          _
        %s274 = sand.u32 %s52, 1
        %s275 = scalar_lea.sflag [#allocation4], %s274
        %s276 = sand.u32 %s52, 1
        %s277 = smul.addr %s276, 512
        %s278 = scalar_lea.vmem [#allocation3], %s277
        %p279 = pneg %p65
        %p280 = pneg %p62
        %s281 = sand.u32 %s23, 1
        %s282 = scalar_lea.sflag [#allocation7], %s281
        %s283 = sand.u32 %s80, 1
        %s284 = smul.addr %s283, 512
        %s285 = scalar_lea.vmem [#allocation6], %s284
        %p286 = pneg %p93
        %p287 = pneg %p90
        %s288 = sand.u32 %s23, 1
        %s289 = scalar_lea.sflag [#allocation7], %s288
        %s290 = sand.u32 %s108, 1
        %s291 = smul.addr %s290, 256
        %s292 = scalar_lea.vmem [#allocation8], %s291
        %p293 = pneg %p121
        %p294 = pneg %p118
        %p295 = pneg %p149
        %p296 = pneg %p146
        %s297 = sand.u32 %s136, 1
        %s298 = scalar_lea.sflag [#allocation5], %s297
        %s299 = sand.u32 %s136, 1
        %s300 = smul.addr %s299, 256
        %s301 = scalar_lea.vmem [#allocation9], %s300
        %s302 = smul.u32 32, %s28
        %s303 = smul.u32 4, %s30
        %s304 = smul.u32 64, %s30
        %s305 = smul.u32 2, %s29
        %s306 = smul.u32 32, %s28
        %s307 = smul.u32 2, %s29
        %s308 = smul.u32 32, %s28
        %s309 = smul.u32 2, %s29
        %p310 = scmp.eq.s32.totalorder %s30, 0
        // Predicated region
        $region45: #{tpu_custom_call.1} parent=31 // pred_check
          %p311 = pneg %p310
        $region46: #{tpu_custom_call.1} parent=31 // pred_check_branch
          %313 = sbr.rel (%p311) target = $region48
        $region47: #{tpu_custom_call.1} parent=31 // pred_region
          %314 = vst [vmem:[#allocation2] sm:$0xff] 0.0
          %315 = vst [vmem:[#allocation2 + $0x8] sm:$0xff] 0.0
          %316 = vst [vmem:[#allocation2 + $0x10] sm:$0xff] 0.0
          %317 = vst [vmem:[#allocation2 + $0x18] sm:$0xff] 0.0
          %318 = vst [vmem:[#allocation2 + $0x20] sm:$0xff] 0.0
          %319 = vst [vmem:[#allocation2 + $0x28] sm:$0xff] 0.0
          %320 = vst [vmem:[#allocation2 + $0x30] sm:$0xff] 0.0
          %321 = vst [vmem:[#allocation2 + $0x38] sm:$0xff] 0.0
          %322 = vst [vmem:[#allocation2 + $0x40] sm:$0xff] 0.0
          %323 = vst [vmem:[#allocation2 + $0x48] sm:$0xff] 0.0
          %324 = vst [vmem:[#allocation2 + $0x50] sm:$0xff] 0.0
          %325 = vst [vmem:[#allocation2 + $0x58] sm:$0xff] 0.0
          %326 = vst [vmem:[#allocation2 + $0x60] sm:$0xff] 0.0
          %327 = vst [vmem:[#allocation2 + $0x68] sm:$0xff] 0.0
          %328 = vst [vmem:[#allocation2 + $0x70] sm:$0xff] 0.0
          %329 = vst [vmem:[#allocation2 + $0x78] sm:$0xff] 0.0
          %330 = vst [vmem:[#allocation2 + $0x80] sm:$0xff] 0.0
          %331 = vst [vmem:[#allocation2 + $0x88] sm:$0xff] 0.0
          %332 = vst [vmem:[#allocation2 + $0x90] sm:$0xff] 0.0
          %333 = vst [vmem:[#allocation2 + $0x98] sm:$0xff] 0.0
          %334 = vst [vmem:[#allocation2 + $0xa0] sm:$0xff] 0.0
          %335 = vst [vmem:[#allocation2 + $0xa8] sm:$0xff] 0.0
          %336 = vst [vmem:[#allocation2 + $0xb0] sm:$0xff] 0.0
          %337 = vst [vmem:[#allocation2 + $0xb8] sm:$0xff] 0.0
          %338 = vst [vmem:[#allocation2 + $0xc0] sm:$0xff] 0.0
          %339 = vst [vmem:[#allocation2 + $0xc8] sm:$0xff] 0.0
          %340 = vst [vmem:[#allocation2 + $0xd0] sm:$0xff] 0.0
          %341 = vst [vmem:[#allocation2 + $0xd8] sm:$0xff] 0.0
          %342 = vst [vmem:[#allocation2 + $0xe0] sm:$0xff] 0.0
          %343 = vst [vmem:[#allocation2 + $0xe8] sm:$0xff] 0.0
          %344 = vst [vmem:[#allocation2 + $0xf0] sm:$0xff] 0.0
          %345 = vst [vmem:[#allocation2 + $0xf8] sm:$0xff] 0.0
          %346 = vst [vmem:[#allocation2 + $0x100] sm:$0xff] 0.0
          %347 = vst [vmem:[#allocation2 + $0x108] sm:$0xff] 0.0
          %348 = vst [vmem:[#allocation2 + $0x110] sm:$0xff] 0.0
          %349 = vst [vmem:[#allocation2 + $0x118] sm:$0xff] 0.0
          %350 = vst [vmem:[#allocation2 + $0x120] sm:$0xff] 0.0
          %351 = vst [vmem:[#allocation2 + $0x128] sm:$0xff] 0.0
          %352 = vst [vmem:[#allocation2 + $0x130] sm:$0xff] 0.0
          %353 = vst [vmem:[#allocation2 + $0x138] sm:$0xff] 0.0
          %354 = vst [vmem:[#allocation2 + $0x140] sm:$0xff] 0.0
          %355 = vst [vmem:[#allocation2 + $0x148] sm:$0xff] 0.0
          %356 = vst [vmem:[#allocation2 + $0x150] sm:$0xff] 0.0
          %357 = vst [vmem:[#allocation2 + $0x158] sm:$0xff] 0.0
          %358 = vst [vmem:[#allocation2 + $0x160] sm:$0xff] 0.0
          %359 = vst [vmem:[#allocation2 + $0x168] sm:$0xff] 0.0
          %360 = vst [vmem:[#allocation2 + $0x170] sm:$0xff] 0.0
          %361 = vst [vmem:[#allocation2 + $0x178] sm:$0xff] 0.0
          %362 = vst [vmem:[#allocation2 + $0x180] sm:$0xff] 0.0
          %363 = vst [vmem:[#allocation2 + $0x188] sm:$0xff] 0.0
          %364 = vst [vmem:[#allocation2 + $0x190] sm:$0xff] 0.0
          %365 = vst [vmem:[#allocation2 + $0x198] sm:$0xff] 0.0
          %366 = vst [vmem:[#allocation2 + $0x1a0] sm:$0xff] 0.0
          %367 = vst [vmem:[#allocation2 + $0x1a8] sm:$0xff] 0.0
          %368 = vst [vmem:[#allocation2 + $0x1b0] sm:$0xff] 0.0
          %369 = vst [vmem:[#allocation2 + $0x1b8] sm:$0xff] 0.0
          %370 = vst [vmem:[#allocation2 + $0x1c0] sm:$0xff] 0.0
          %371 = vst [vmem:[#allocation2 + $0x1c8] sm:$0xff] 0.0
          %372 = vst [vmem:[#allocation2 + $0x1d0] sm:$0xff] 0.0
          %373 = vst [vmem:[#allocation2 + $0x1d8] sm:$0xff] 0.0
          %374 = vst [vmem:[#allocation2 + $0x1e0] sm:$0xff] 0.0
          %375 = vst [vmem:[#allocation2 + $0x1e8] sm:$0xff] 0.0
          %376 = vst [vmem:[#allocation2 + $0x1f0] sm:$0xff] 0.0
          %377 = vst [vmem:[#allocation2 + $0x1f8] sm:$0xff] 0.0
        $region48: #{tpu_custom_call.1} parent=31 // pred_fallthru
          _
        %v378 = vld [vmem:[#allocation2] sm:$0xff]
        %v379 = vld [vmem:[#allocation2 + $0x8] sm:$0xff]
        %v380 = vld [vmem:[#allocation2 + $0x10] sm:$0xff]
        %v381 = vld [vmem:[#allocation2 + $0x18] sm:$0xff]
        %v382 = vld [vmem:[#allocation2 + $0x20] sm:$0xff]
        %v383 = vld [vmem:[#allocation2 + $0x28] sm:$0xff]
        %v384 = vld [vmem:[#allocation2 + $0x30] sm:$0xff]
        %v385 = vld [vmem:[#allocation2 + $0x38] sm:$0xff]
        %v386 = vld [vmem:[#allocation2 + $0x40] sm:$0xff]
        %v387 = vld [vmem:[#allocation2 + $0x48] sm:$0xff]
        %v388 = vld [vmem:[#allocation2 + $0x50] sm:$0xff]
        %v389 = vld [vmem:[#allocation2 + $0x58] sm:$0xff]
        %v390 = vld [vmem:[#allocation2 + $0x60] sm:$0xff]
        %v391 = vld [vmem:[#allocation2 + $0x68] sm:$0xff]
        %v392 = vld [vmem:[#allocation2 + $0x70] sm:$0xff]
        %v393 = vld [vmem:[#allocation2 + $0x78] sm:$0xff]
        %v394 = vld [vmem:[#allocation2 + $0x80] sm:$0xff]
        %v395 = vld [vmem:[#allocation2 + $0x88] sm:$0xff]
        %v396 = vld [vmem:[#allocation2 + $0x90] sm:$0xff]
        %v397 = vld [vmem:[#allocation2 + $0x98] sm:$0xff]
        %v398 = vld [vmem:[#allocation2 + $0xa0] sm:$0xff]
        %v399 = vld [vmem:[#allocation2 + $0xa8] sm:$0xff]
        %v400 = vld [vmem:[#allocation2 + $0xb0] sm:$0xff]
        %v401 = vld [vmem:[#allocation2 + $0xb8] sm:$0xff]
        %v402 = vld [vmem:[#allocation2 + $0xc0] sm:$0xff]
        %v403 = vld [vmem:[#allocation2 + $0xc8] sm:$0xff]
        %v404 = vld [vmem:[#allocation2 + $0xd0] sm:$0xff]
        %v405 = vld [vmem:[#allocation2 + $0xd8] sm:$0xff]
        %v406 = vld [vmem:[#allocation2 + $0xe0] sm:$0xff]
        %v407 = vld [vmem:[#allocation2 + $0xe8] sm:$0xff]
        %v408 = vld [vmem:[#allocation2 + $0xf0] sm:$0xff]
        %v409 = vld [vmem:[#allocation2 + $0xf8] sm:$0xff]
        %v410 = vld [vmem:[#allocation2 + $0x100] sm:$0xff]
        %v411 = vld [vmem:[#allocation2 + $0x108] sm:$0xff]
        %v412 = vld [vmem:[#allocation2 + $0x110] sm:$0xff]
        %v413 = vld [vmem:[#allocation2 + $0x118] sm:$0xff]
        %v414 = vld [vmem:[#allocation2 + $0x120] sm:$0xff]
        %v415 = vld [vmem:[#allocation2 + $0x128] sm:$0xff]
        %v416 = vld [vmem:[#allocation2 + $0x130] sm:$0xff]
        %v417 = vld [vmem:[#allocation2 + $0x138] sm:$0xff]
        %v418 = vld [vmem:[#allocation2 + $0x140] sm:$0xff]
        %v419 = vld [vmem:[#allocation2 + $0x148] sm:$0xff]
        %v420 = vld [vmem:[#allocation2 + $0x150] sm:$0xff]
        %v421 = vld [vmem:[#allocation2 + $0x158] sm:$0xff]
        %v422 = vld [vmem:[#allocation2 + $0x160] sm:$0xff]
        %v423 = vld [vmem:[#allocation2 + $0x168] sm:$0xff]
        %v424 = vld [vmem:[#allocation2 + $0x170] sm:$0xff]
        %v425 = vld [vmem:[#allocation2 + $0x178] sm:$0xff]
        %v426 = vld [vmem:[#allocation2 + $0x180] sm:$0xff]
        %v427 = vld [vmem:[#allocation2 + $0x188] sm:$0xff]
        %v428 = vld [vmem:[#allocation2 + $0x190] sm:$0xff]
        %v429 = vld [vmem:[#allocation2 + $0x198] sm:$0xff]
        %v430 = vld [vmem:[#allocation2 + $0x1a0] sm:$0xff]
        %v431 = vld [vmem:[#allocation2 + $0x1a8] sm:$0xff]
        %v432 = vld [vmem:[#allocation2 + $0x1b0] sm:$0xff]
        %v433 = vld [vmem:[#allocation2 + $0x1b8] sm:$0xff]
        %v434 = vld [vmem:[#allocation2 + $0x1c0] sm:$0xff]
        %v435 = vld [vmem:[#allocation2 + $0x1c8] sm:$0xff]
        %v436 = vld [vmem:[#allocation2 + $0x1d0] sm:$0xff]
        %v437 = vld [vmem:[#allocation2 + $0x1d8] sm:$0xff]
        %v438 = vld [vmem:[#allocation2 + $0x1e0] sm:$0xff]
        %v439 = vld [vmem:[#allocation2 + $0x1e8] sm:$0xff]
        %v440 = vld [vmem:[#allocation2 + $0x1f0] sm:$0xff]
        %v441 = vld [vmem:[#allocation2 + $0x1f8] sm:$0xff]
        %v442 = vld [vmem:[%s251] sm:$0xff]
        %v443 = vld [vmem:[%s251 + $0x8] sm:$0xff]
        %v444 = vld [vmem:[%s251 + $0x10] sm:$0xff]
        %v445 = vld [vmem:[%s251 + $0x18] sm:$0xff]
        %v446 = vld [vmem:[%s251 + $0x20] sm:$0xff]
        %v447 = vld [vmem:[%s251 + $0x28] sm:$0xff]
        %v448 = vld [vmem:[%s251 + $0x30] sm:$0xff]
        %v449 = vld [vmem:[%s251 + $0x38] sm:$0xff]
        %v450 = vld [vmem:[%s251 + $0x40] sm:$0xff]
        %v451 = vld [vmem:[%s251 + $0x48] sm:$0xff]
        %v452 = vld [vmem:[%s251 + $0x50] sm:$0xff]
        %v453 = vld [vmem:[%s251 + $0x58] sm:$0xff]
        %v454 = vld [vmem:[%s251 + $0x60] sm:$0xff]
        %v455 = vld [vmem:[%s251 + $0x68] sm:$0xff]
        %v456 = vld [vmem:[%s251 + $0x70] sm:$0xff]
        %v457 = vld [vmem:[%s251 + $0x78] sm:$0xff]
        %v458 = vld [vmem:[%s251 + $0x80] sm:$0xff]
        %v459 = vld [vmem:[%s251 + $0x88] sm:$0xff]
        %v460 = vld [vmem:[%s251 + $0x90] sm:$0xff]
        %v461 = vld [vmem:[%s251 + $0x98] sm:$0xff]
        %v462 = vld [vmem:[%s251 + $0xa0] sm:$0xff]
        %v463 = vld [vmem:[%s251 + $0xa8] sm:$0xff]
        %v464 = vld [vmem:[%s251 + $0xb0] sm:$0xff]
        %v465 = vld [vmem:[%s251 + $0xb8] sm:$0xff]
        %v466 = vld [vmem:[%s251 + $0xc0] sm:$0xff]
        %v467 = vld [vmem:[%s251 + $0xc8] sm:$0xff]
        %v468 = vld [vmem:[%s251 + $0xd0] sm:$0xff]
        %v469 = vld [vmem:[%s251 + $0xd8] sm:$0xff]
        %v470 = vld [vmem:[%s251 + $0xe0] sm:$0xff]
        %v471 = vld [vmem:[%s251 + $0xe8] sm:$0xff]
        %v472 = vld [vmem:[%s251 + $0xf0] sm:$0xff]
        %v473 = vld [vmem:[%s251 + $0xf8] sm:$0xff]
        %v474 = vld [vmem:[%s251 + $0x100] sm:$0xff]
        %v475 = vld [vmem:[%s251 + $0x108] sm:$0xff]
        %v476 = vld [vmem:[%s251 + $0x110] sm:$0xff]
        %v477 = vld [vmem:[%s251 + $0x118] sm:$0xff]
        %v478 = vld [vmem:[%s251 + $0x120] sm:$0xff]
        %v479 = vld [vmem:[%s251 + $0x128] sm:$0xff]
        %v480 = vld [vmem:[%s251 + $0x130] sm:$0xff]
        %v481 = vld [vmem:[%s251 + $0x138] sm:$0xff]
        %v482 = vld [vmem:[%s251 + $0x140] sm:$0xff]
        %v483 = vld [vmem:[%s251 + $0x148] sm:$0xff]
        %v484 = vld [vmem:[%s251 + $0x150] sm:$0xff]
        %v485 = vld [vmem:[%s251 + $0x158] sm:$0xff]
        %v486 = vld [vmem:[%s251 + $0x160] sm:$0xff]
        %v487 = vld [vmem:[%s251 + $0x168] sm:$0xff]
        %v488 = vld [vmem:[%s251 + $0x170] sm:$0xff]
        %v489 = vld [vmem:[%s251 + $0x178] sm:$0xff]
        %v490 = vld [vmem:[%s251 + $0x180] sm:$0xff]
        %v491 = vld [vmem:[%s251 + $0x188] sm:$0xff]
        %v492 = vld [vmem:[%s251 + $0x190] sm:$0xff]
        %v493 = vld [vmem:[%s251 + $0x198] sm:$0xff]
        %v494 = vld [vmem:[%s251 + $0x1a0] sm:$0xff]
        %v495 = vld [vmem:[%s251 + $0x1a8] sm:$0xff]
        %v496 = vld [vmem:[%s251 + $0x1b0] sm:$0xff]
        %v497 = vld [vmem:[%s251 + $0x1b8] sm:$0xff]
        %v498 = vld [vmem:[%s251 + $0x1c0] sm:$0xff]
        %v499 = vld [vmem:[%s251 + $0x1c8] sm:$0xff]
        %v500 = vld [vmem:[%s251 + $0x1d0] sm:$0xff]
        %v501 = vld [vmem:[%s251 + $0x1d8] sm:$0xff]
        %v502 = vld [vmem:[%s251 + $0x1e0] sm:$0xff]
        %v503 = vld [vmem:[%s251 + $0x1e8] sm:$0xff]
        %v504 = vld [vmem:[%s251 + $0x1f0] sm:$0xff]
        %v505 = vld [vmem:[%s251 + $0x1f8] sm:$0xff]
        %v506 = vld [vmem:[%s260] sm:$0xff]
        %v507 = vld [vmem:[%s260 + $0x8] sm:$0xff]
        %v508 = vld [vmem:[%s260 + $0x10] sm:$0xff]
        %v509 = vld [vmem:[%s260 + $0x18] sm:$0xff]
        %v510 = vld [vmem:[%s260 + $0x20] sm:$0xff]
        %v511 = vld [vmem:[%s260 + $0x28] sm:$0xff]
        %v512 = vld [vmem:[%s260 + $0x30] sm:$0xff]
        %v513 = vld [vmem:[%s260 + $0x38] sm:$0xff]
        %v514 = vld [vmem:[%s260 + $0x40] sm:$0xff]
        %v515 = vld [vmem:[%s260 + $0x48] sm:$0xff]
        %v516 = vld [vmem:[%s260 + $0x50] sm:$0xff]
        %v517 = vld [vmem:[%s260 + $0x58] sm:$0xff]
        %v518 = vld [vmem:[%s260 + $0x60] sm:$0xff]
        %v519 = vld [vmem:[%s260 + $0x68] sm:$0xff]
        %v520 = vld [vmem:[%s260 + $0x70] sm:$0xff]
        %v521 = vld [vmem:[%s260 + $0x78] sm:$0xff]
        %v522 = vld [vmem:[%s260 + $0x80] sm:$0xff]
        %v523 = vld [vmem:[%s260 + $0x88] sm:$0xff]
        %v524 = vld [vmem:[%s260 + $0x90] sm:$0xff]
        %v525 = vld [vmem:[%s260 + $0x98] sm:$0xff]
        %v526 = vld [vmem:[%s260 + $0xa0] sm:$0xff]
        %v527 = vld [vmem:[%s260 + $0xa8] sm:$0xff]
        %v528 = vld [vmem:[%s260 + $0xb0] sm:$0xff]
        %v529 = vld [vmem:[%s260 + $0xb8] sm:$0xff]
        %v530 = vld [vmem:[%s260 + $0xc0] sm:$0xff]
        %v531 = vld [vmem:[%s260 + $0xc8] sm:$0xff]
        %v532 = vld [vmem:[%s260 + $0xd0] sm:$0xff]
        %v533 = vld [vmem:[%s260 + $0xd8] sm:$0xff]
        %v534 = vld [vmem:[%s260 + $0xe0] sm:$0xff]
        %v535 = vld [vmem:[%s260 + $0xe8] sm:$0xff]
        %v536 = vld [vmem:[%s260 + $0xf0] sm:$0xff]
        %v537 = vld [vmem:[%s260 + $0xf8] sm:$0xff]
        %v538 = vld [vmem:[%s260 + $0x100] sm:$0xff]
        %v539 = vld [vmem:[%s260 + $0x108] sm:$0xff]
        %v540 = vld [vmem:[%s260 + $0x110] sm:$0xff]
        %v541 = vld [vmem:[%s260 + $0x118] sm:$0xff]
        %v542 = vld [vmem:[%s260 + $0x120] sm:$0xff]
        %v543 = vld [vmem:[%s260 + $0x128] sm:$0xff]
        %v544 = vld [vmem:[%s260 + $0x130] sm:$0xff]
        %v545 = vld [vmem:[%s260 + $0x138] sm:$0xff]
        %v546 = vld [vmem:[%s260 + $0x140] sm:$0xff]
        %v547 = vld [vmem:[%s260 + $0x148] sm:$0xff]
        %v548 = vld [vmem:[%s260 + $0x150] sm:$0xff]
        %v549 = vld [vmem:[%s260 + $0x158] sm:$0xff]
        %v550 = vld [vmem:[%s260 + $0x160] sm:$0xff]
        %v551 = vld [vmem:[%s260 + $0x168] sm:$0xff]
        %v552 = vld [vmem:[%s260 + $0x170] sm:$0xff]
        %v553 = vld [vmem:[%s260 + $0x178] sm:$0xff]
        %v554 = vld [vmem:[%s260 + $0x180] sm:$0xff]
        %v555 = vld [vmem:[%s260 + $0x188] sm:$0xff]
        %v556 = vld [vmem:[%s260 + $0x190] sm:$0xff]
        %v557 = vld [vmem:[%s260 + $0x198] sm:$0xff]
        %v558 = vld [vmem:[%s260 + $0x1a0] sm:$0xff]
        %v559 = vld [vmem:[%s260 + $0x1a8] sm:$0xff]
        %v560 = vld [vmem:[%s260 + $0x1b0] sm:$0xff]
        %v561 = vld [vmem:[%s260 + $0x1b8] sm:$0xff]
        %v562 = vld [vmem:[%s260 + $0x1c0] sm:$0xff]
        %v563 = vld [vmem:[%s260 + $0x1c8] sm:$0xff]
        %v564 = vld [vmem:[%s260 + $0x1d0] sm:$0xff]
        %v565 = vld [vmem:[%s260 + $0x1d8] sm:$0xff]
        %v566 = vld [vmem:[%s260 + $0x1e0] sm:$0xff]
        %v567 = vld [vmem:[%s260 + $0x1e8] sm:$0xff]
        %v568 = vld [vmem:[%s260 + $0x1f0] sm:$0xff]
        %v569 = vld [vmem:[%s260 + $0x1f8] sm:$0xff]
        %v634 = vunpack.c.l.b16 %v442
        %v635 = vunpack.c.h.b16 %v442
        %v636 = vunpack.c.l.b16 %v443
        %v637 = vunpack.c.h.b16 %v443
        %v638 = vunpack.c.l.b16 %v444
        %v639 = vunpack.c.h.b16 %v444
        %v640 = vunpack.c.l.b16 %v445
        %v641 = vunpack.c.h.b16 %v445
        %v642 = vunpack.c.l.b16 %v446
        %v643 = vunpack.c.h.b16 %v446
        %v644 = vunpack.c.l.b16 %v447
        %v645 = vunpack.c.h.b16 %v447
        %v646 = vunpack.c.l.b16 %v448
        %v647 = vunpack.c.h.b16 %v448
        %v648 = vunpack.c.l.b16 %v449
        %v649 = vunpack.c.h.b16 %v449
        %v650 = vunpack.c.l.b16 %v450
        %v651 = vunpack.c.h.b16 %v450
        %v652 = vunpack.c.l.b16 %v451
        %v653 = vunpack.c.h.b16 %v451
        %v654 = vunpack.c.l.b16 %v452
        %v655 = vunpack.c.h.b16 %v452
        %v656 = vunpack.c.l.b16 %v453
        %v657 = vunpack.c.h.b16 %v453
        %v658 = vunpack.c.l.b16 %v454
        %v659 = vunpack.c.h.b16 %v454
        %v660 = vunpack.c.l.b16 %v455
        %v661 = vunpack.c.h.b16 %v455
        %v662 = vunpack.c.l.b16 %v456
        %v663 = vunpack.c.h.b16 %v456
        %v664 = vunpack.c.l.b16 %v457
        %v665 = vunpack.c.h.b16 %v457
        %v666 = vunpack.c.l.b16 %v458
        %v667 = vunpack.c.h.b16 %v458
        %v668 = vunpack.c.l.b16 %v459
        %v669 = vunpack.c.h.b16 %v459
        %v670 = vunpack.c.l.b16 %v460
        %v671 = vunpack.c.h.b16 %v460
        %v672 = vunpack.c.l.b16 %v461
        %v673 = vunpack.c.h.b16 %v461
        %v674 = vunpack.c.l.b16 %v462
        %v675 = vunpack.c.h.b16 %v462
        %v676 = vunpack.c.l.b16 %v463
        %v677 = vunpack.c.h.b16 %v463
        %v678 = vunpack.c.l.b16 %v464
        %v679 = vunpack.c.h.b16 %v464
        %v680 = vunpack.c.l.b16 %v465
        %v681 = vunpack.c.h.b16 %v465
        %v682 = vunpack.c.l.b16 %v466
        %v683 = vunpack.c.h.b16 %v466
        %v684 = vunpack.c.l.b16 %v467
        %v685 = vunpack.c.h.b16 %v467
        %v686 = vunpack.c.l.b16 %v468
        %v687 = vunpack.c.h.b16 %v468
        %v688 = vunpack.c.l.b16 %v469
        %v689 = vunpack.c.h.b16 %v469
        %v690 = vunpack.c.l.b16 %v470
        %v691 = vunpack.c.h.b16 %v470
        %v692 = vunpack.c.l.b16 %v471
        %v693 = vunpack.c.h.b16 %v471
        %v694 = vunpack.c.l.b16 %v472
        %v695 = vunpack.c.h.b16 %v472
        %v696 = vunpack.c.l.b16 %v473
        %v697 = vunpack.c.h.b16 %v473
        %v698 = vunpack.c.l.b16 %v474
        %v699 = vunpack.c.h.b16 %v474
        %v700 = vunpack.c.l.b16 %v475
        %v701 = vunpack.c.h.b16 %v475
        %v702 = vunpack.c.l.b16 %v476
        %v703 = vunpack.c.h.b16 %v476
        %v704 = vunpack.c.l.b16 %v477
        %v705 = vunpack.c.h.b16 %v477
        %v706 = vunpack.c.l.b16 %v478
        %v707 = vunpack.c.h.b16 %v478
        %v708 = vunpack.c.l.b16 %v479
        %v709 = vunpack.c.h.b16 %v479
        %v710 = vunpack.c.l.b16 %v480
        %v711 = vunpack.c.h.b16 %v480
        %v712 = vunpack.c.l.b16 %v481
        %v713 = vunpack.c.h.b16 %v481
        %v714 = vunpack.c.l.b16 %v482
        %v715 = vunpack.c.h.b16 %v482
        %v716 = vunpack.c.l.b16 %v483
        %v717 = vunpack.c.h.b16 %v483
        %v718 = vunpack.c.l.b16 %v484
        %v719 = vunpack.c.h.b16 %v484
        %v720 = vunpack.c.l.b16 %v485
        %v721 = vunpack.c.h.b16 %v485
        %v722 = vunpack.c.l.b16 %v486
        %v723 = vunpack.c.h.b16 %v486
        %v724 = vunpack.c.l.b16 %v487
        %v725 = vunpack.c.h.b16 %v487
        %v726 = vunpack.c.l.b16 %v488
        %v727 = vunpack.c.h.b16 %v488
        %v728 = vunpack.c.l.b16 %v489
        %v729 = vunpack.c.h.b16 %v489
        %v730 = vunpack.c.l.b16 %v490
        %v731 = vunpack.c.h.b16 %v490
        %v732 = vunpack.c.l.b16 %v491
        %v733 = vunpack.c.h.b16 %v491
        %v734 = vunpack.c.l.b16 %v492
        %v735 = vunpack.c.h.b16 %v492
        %v736 = vunpack.c.l.b16 %v493
        %v737 = vunpack.c.h.b16 %v493
        %v738 = vunpack.c.l.b16 %v494
        %v739 = vunpack.c.h.b16 %v494
        %v740 = vunpack.c.l.b16 %v495
        %v741 = vunpack.c.h.b16 %v495
        %v742 = vunpack.c.l.b16 %v496
        %v743 = vunpack.c.h.b16 %v496
        %v744 = vunpack.c.l.b16 %v497
        %v745 = vunpack.c.h.b16 %v497
        %v746 = vunpack.c.l.b16 %v498
        %v747 = vunpack.c.h.b16 %v498
        %v748 = vunpack.c.l.b16 %v499
        %v749 = vunpack.c.h.b16 %v499
        %v750 = vunpack.c.l.b16 %v500
        %v751 = vunpack.c.h.b16 %v500
        %v752 = vunpack.c.l.b16 %v501
        %v753 = vunpack.c.h.b16 %v501
        %v754 = vunpack.c.l.b16 %v502
        %v755 = vunpack.c.h.b16 %v502
        %v756 = vunpack.c.l.b16 %v503
        %v757 = vunpack.c.h.b16 %v503
        %v758 = vunpack.c.l.b16 %v504
        %v759 = vunpack.c.h.b16 %v504
        %v760 = vunpack.c.l.b16 %v505
        %v761 = vunpack.c.h.b16 %v505
        %v762 = vpack.c.b16 %v638, %v634
        %v763 = vpack.c.b16 %v639, %v635
        %v764 = vpack.c.b16 %v640, %v636
        %v765 = vpack.c.b16 %v641, %v637
        %v766 = vpack.c.b16 %v646, %v642
        %v767 = vpack.c.b16 %v647, %v643
        %v768 = vpack.c.b16 %v648, %v644
        %v769 = vpack.c.b16 %v649, %v645
        %v770 = vpack.c.b16 %v654, %v650
        %v771 = vpack.c.b16 %v655, %v651
        %v772 = vpack.c.b16 %v656, %v652
        %v773 = vpack.c.b16 %v657, %v653
        %v774 = vpack.c.b16 %v662, %v658
        %v775 = vpack.c.b16 %v663, %v659
        %v776 = vpack.c.b16 %v664, %v660
        %v777 = vpack.c.b16 %v665, %v661
        %v778 = vpack.c.b16 %v670, %v666
        %v779 = vpack.c.b16 %v671, %v667
        %v780 = vpack.c.b16 %v672, %v668
        %v781 = vpack.c.b16 %v673, %v669
        %v782 = vpack.c.b16 %v678, %v674
        %v783 = vpack.c.b16 %v679, %v675
        %v784 = vpack.c.b16 %v680, %v676
        %v785 = vpack.c.b16 %v681, %v677
        %v786 = vpack.c.b16 %v686, %v682
        %v787 = vpack.c.b16 %v687, %v683
        %v788 = vpack.c.b16 %v688, %v684
        %v789 = vpack.c.b16 %v689, %v685
        %v790 = vpack.c.b16 %v694, %v690
        %v791 = vpack.c.b16 %v695, %v691
        %v792 = vpack.c.b16 %v696, %v692
        %v793 = vpack.c.b16 %v697, %v693
        %v794 = vpack.c.b16 %v702, %v698
        %v795 = vpack.c.b16 %v703, %v699
        %v796 = vpack.c.b16 %v704, %v700
        %v797 = vpack.c.b16 %v705, %v701
        %v798 = vpack.c.b16 %v710, %v706
        %v799 = vpack.c.b16 %v711, %v707
        %v800 = vpack.c.b16 %v712, %v708
        %v801 = vpack.c.b16 %v713, %v709
        %v802 = vpack.c.b16 %v718, %v714
        %v803 = vpack.c.b16 %v719, %v715
        %v804 = vpack.c.b16 %v720, %v716
        %v805 = vpack.c.b16 %v721, %v717
        %v806 = vpack.c.b16 %v726, %v722
        %v807 = vpack.c.b16 %v727, %v723
        %v808 = vpack.c.b16 %v728, %v724
        %v809 = vpack.c.b16 %v729, %v725
        %v810 = vpack.c.b16 %v734, %v730
        %v811 = vpack.c.b16 %v735, %v731
        %v812 = vpack.c.b16 %v736, %v732
        %v813 = vpack.c.b16 %v737, %v733
        %v814 = vpack.c.b16 %v742, %v738
        %v815 = vpack.c.b16 %v743, %v739
        %v816 = vpack.c.b16 %v744, %v740
        %v817 = vpack.c.b16 %v745, %v741
        %v818 = vpack.c.b16 %v750, %v746
        %v819 = vpack.c.b16 %v751, %v747
        %v820 = vpack.c.b16 %v752, %v748
        %v821 = vpack.c.b16 %v753, %v749
        %v822 = vpack.c.b16 %v758, %v754
        %v823 = vpack.c.b16 %v759, %v755
        %v824 = vpack.c.b16 %v760, %v756
        %v825 = vpack.c.b16 %v761, %v757
        %v954 = vunpack.c.l.b16 %v506
        %v955 = vunpack.c.h.b16 %v506
        %v956 = vunpack.c.l.b16 %v507
        %v957 = vunpack.c.h.b16 %v507
        %v958 = vunpack.c.l.b16 %v508
        %v959 = vunpack.c.h.b16 %v508
        %v960 = vunpack.c.l.b16 %v509
        %v961 = vunpack.c.h.b16 %v509
        %v962 = vunpack.c.l.b16 %v510
        %v963 = vunpack.c.h.b16 %v510
        %v964 = vunpack.c.l.b16 %v511
        %v965 = vunpack.c.h.b16 %v511
        %v966 = vunpack.c.l.b16 %v512
        %v967 = vunpack.c.h.b16 %v512
        %v968 = vunpack.c.l.b16 %v513
        %v969 = vunpack.c.h.b16 %v513
        %v970 = vunpack.c.l.b16 %v514
        %v971 = vunpack.c.h.b16 %v514
        %v972 = vunpack.c.l.b16 %v515
        %v973 = vunpack.c.h.b16 %v515
        %v974 = vunpack.c.l.b16 %v516
        %v975 = vunpack.c.h.b16 %v516
        %v976 = vunpack.c.l.b16 %v517
        %v977 = vunpack.c.h.b16 %v517
        %v978 = vunpack.c.l.b16 %v518
        %v979 = vunpack.c.h.b16 %v518
        %v980 = vunpack.c.l.b16 %v519
        %v981 = vunpack.c.h.b16 %v519
        %v982 = vunpack.c.l.b16 %v520
        %v983 = vunpack.c.h.b16 %v520
        %v984 = vunpack.c.l.b16 %v521
        %v985 = vunpack.c.h.b16 %v521
        %v986 = vunpack.c.l.b16 %v522
        %v987 = vunpack.c.h.b16 %v522
        %v988 = vunpack.c.l.b16 %v523
        %v989 = vunpack.c.h.b16 %v523
        %v990 = vunpack.c.l.b16 %v524
        %v991 = vunpack.c.h.b16 %v524
        %v992 = vunpack.c.l.b16 %v525
        %v993 = vunpack.c.h.b16 %v525
        %v994 = vunpack.c.l.b16 %v526
        %v995 = vunpack.c.h.b16 %v526
        %v996 = vunpack.c.l.b16 %v527
        %v997 = vunpack.c.h.b16 %v527
        %v998 = vunpack.c.l.b16 %v528
        %v999 = vunpack.c.h.b16 %v528
        %v1000 = vunpack.c.l.b16 %v529
        %v1001 = vunpack.c.h.b16 %v529
        %v1002 = vunpack.c.l.b16 %v530
        %v1003 = vunpack.c.h.b16 %v530
        %v1004 = vunpack.c.l.b16 %v531
        %v1005 = vunpack.c.h.b16 %v531
        %v1006 = vunpack.c.l.b16 %v532
        %v1007 = vunpack.c.h.b16 %v532
        %v1008 = vunpack.c.l.b16 %v533
        %v1009 = vunpack.c.h.b16 %v533
        %v1010 = vunpack.c.l.b16 %v534
        %v1011 = vunpack.c.h.b16 %v534
        %v1012 = vunpack.c.l.b16 %v535
        %v1013 = vunpack.c.h.b16 %v535
        %v1014 = vunpack.c.l.b16 %v536
        %v1015 = vunpack.c.h.b16 %v536
        %v1016 = vunpack.c.l.b16 %v537
        %v1017 = vunpack.c.h.b16 %v537
        %v1018 = vunpack.c.l.b16 %v538
        %v1019 = vunpack.c.h.b16 %v538
        %v1020 = vunpack.c.l.b16 %v539
        %v1021 = vunpack.c.h.b16 %v539
        %v1022 = vunpack.c.l.b16 %v540
        %v1023 = vunpack.c.h.b16 %v540
        %v1024 = vunpack.c.l.b16 %v541
        %v1025 = vunpack.c.h.b16 %v541
        %v1026 = vunpack.c.l.b16 %v542
        %v1027 = vunpack.c.h.b16 %v542
        %v1028 = vunpack.c.l.b16 %v543
        %v1029 = vunpack.c.h.b16 %v543
        %v1030 = vunpack.c.l.b16 %v544
        %v1031 = vunpack.c.h.b16 %v544
        %v1032 = vunpack.c.l.b16 %v545
        %v1033 = vunpack.c.h.b16 %v545
        %v1034 = vunpack.c.l.b16 %v546
        %v1035 = vunpack.c.h.b16 %v546
        %v1036 = vunpack.c.l.b16 %v547
        %v1037 = vunpack.c.h.b16 %v547
        %v1038 = vunpack.c.l.b16 %v548
        %v1039 = vunpack.c.h.b16 %v548
        %v1040 = vunpack.c.l.b16 %v549
        %v1041 = vunpack.c.h.b16 %v549
        %v1042 = vunpack.c.l.b16 %v550
        %v1043 = vunpack.c.h.b16 %v550
        %v1044 = vunpack.c.l.b16 %v551
        %v1045 = vunpack.c.h.b16 %v551
        %v1046 = vunpack.c.l.b16 %v552
        %v1047 = vunpack.c.h.b16 %v552
        %v1048 = vunpack.c.l.b16 %v553
        %v1049 = vunpack.c.h.b16 %v553
        %v1050 = vunpack.c.l.b16 %v554
        %v1051 = vunpack.c.h.b16 %v554
        %v1052 = vunpack.c.l.b16 %v555
        %v1053 = vunpack.c.h.b16 %v555
        %v1054 = vunpack.c.l.b16 %v556
        %v1055 = vunpack.c.h.b16 %v556
        %v1056 = vunpack.c.l.b16 %v557
        %v1057 = vunpack.c.h.b16 %v557
        %v1058 = vunpack.c.l.b16 %v558
        %v1059 = vunpack.c.h.b16 %v558
        %v1060 = vunpack.c.l.b16 %v559
        %v1061 = vunpack.c.h.b16 %v559
        %v1062 = vunpack.c.l.b16 %v560
        %v1063 = vunpack.c.h.b16 %v560
        %v1064 = vunpack.c.l.b16 %v561
        %v1065 = vunpack.c.h.b16 %v561
        %v1066 = vunpack.c.l.b16 %v562
        %v1067 = vunpack.c.h.b16 %v562
        %v1068 = vunpack.c.l.b16 %v563
        %v1069 = vunpack.c.h.b16 %v563
        %v1070 = vunpack.c.l.b16 %v564
        %v1071 = vunpack.c.h.b16 %v564
        %v1072 = vunpack.c.l.b16 %v565
        %v1073 = vunpack.c.h.b16 %v565
        %v1074 = vunpack.c.l.b16 %v566
        %v1075 = vunpack.c.h.b16 %v566
        %v1076 = vunpack.c.l.b16 %v567
        %v1077 = vunpack.c.h.b16 %v567
        %v1078 = vunpack.c.l.b16 %v568
        %v1079 = vunpack.c.h.b16 %v568
        %v1080 = vunpack.c.l.b16 %v569
        %v1081 = vunpack.c.h.b16 %v569
        %v1082 = vpack.c.b16 %v956, %v954
        %v1083 = vpack.c.b16 %v957, %v955
        %v1084 = vpack.c.b16 %v960, %v958
        %v1085 = vpack.c.b16 %v961, %v959
        %v1086 = vpack.c.b16 %v964, %v962
        %v1087 = vpack.c.b16 %v965, %v963
        %v1088 = vpack.c.b16 %v968, %v966
        %v1089 = vpack.c.b16 %v969, %v967
        %v1090 = vpack.c.b16 %v972, %v970
        %v1091 = vpack.c.b16 %v973, %v971
        %v1092 = vpack.c.b16 %v976, %v974
        %v1093 = vpack.c.b16 %v977, %v975
        %v1094 = vpack.c.b16 %v980, %v978
        %v1095 = vpack.c.b16 %v981, %v979
        %v1096 = vpack.c.b16 %v984, %v982
        %v1097 = vpack.c.b16 %v985, %v983
        %v1098 = vpack.c.b16 %v988, %v986
        %v1099 = vpack.c.b16 %v989, %v987
        %v1100 = vpack.c.b16 %v992, %v990
        %v1101 = vpack.c.b16 %v993, %v991
        %v1102 = vpack.c.b16 %v996, %v994
        %v1103 = vpack.c.b16 %v997, %v995
        %v1104 = vpack.c.b16 %v1000, %v998
        %v1105 = vpack.c.b16 %v1001, %v999
        %v1106 = vpack.c.b16 %v1004, %v1002
        %v1107 = vpack.c.b16 %v1005, %v1003
        %v1108 = vpack.c.b16 %v1008, %v1006
        %v1109 = vpack.c.b16 %v1009, %v1007
        %v1110 = vpack.c.b16 %v1012, %v1010
        %v1111 = vpack.c.b16 %v1013, %v1011
        %v1112 = vpack.c.b16 %v1016, %v1014
        %v1113 = vpack.c.b16 %v1017, %v1015
        %v1114 = vpack.c.b16 %v1020, %v1018
        %v1115 = vpack.c.b16 %v1021, %v1019
        %v1116 = vpack.c.b16 %v1024, %v1022
        %v1117 = vpack.c.b16 %v1025, %v1023
        %v1118 = vpack.c.b16 %v1028, %v1026
        %v1119 = vpack.c.b16 %v1029, %v1027
        %v1120 = vpack.c.b16 %v1032, %v1030
        %v1121 = vpack.c.b16 %v1033, %v1031
        %v1122 = vpack.c.b16 %v1036, %v1034
        %v1123 = vpack.c.b16 %v1037, %v1035
        %v1124 = vpack.c.b16 %v1040, %v1038
        %v1125 = vpack.c.b16 %v1041, %v1039
        %v1126 = vpack.c.b16 %v1044, %v1042
        %v1127 = vpack.c.b16 %v1045, %v1043
        %v1128 = vpack.c.b16 %v1048, %v1046
        %v1129 = vpack.c.b16 %v1049, %v1047
        %v1130 = vpack.c.b16 %v1052, %v1050
        %v1131 = vpack.c.b16 %v1053, %v1051
        %v1132 = vpack.c.b16 %v1056, %v1054
        %v1133 = vpack.c.b16 %v1057, %v1055
        %v1134 = vpack.c.b16 %v1060, %v1058
        %v1135 = vpack.c.b16 %v1061, %v1059
        %v1136 = vpack.c.b16 %v1064, %v1062
        %v1137 = vpack.c.b16 %v1065, %v1063
        %v1138 = vpack.c.b16 %v1068, %v1066
        %v1139 = vpack.c.b16 %v1069, %v1067
        %v1140 = vpack.c.b16 %v1072, %v1070
        %v1141 = vpack.c.b16 %v1073, %v1071
        %v1142 = vpack.c.b16 %v1076, %v1074
        %v1143 = vpack.c.b16 %v1077, %v1075
        %v1144 = vpack.c.b16 %v1080, %v1078
        %v1145 = vpack.c.b16 %v1081, %v1079
        %1210 = vmatprep.subr.bf16.mxu0 %v1083
        %1211 = vmatpush1.bf16.msra.mxu0 %v1082
        %1212 = vmatprep.subr.bf16.mxu0 %v1085
        %1213 = vmatpush1.bf16.msra.mxu0 %v1084
        %1214 = vmatprep.subr.bf16.mxu0 %v1087
        %1215 = vmatpush1.bf16.msra.mxu0 %v1086
        %1216 = vmatprep.subr.bf16.mxu0 %v1089
        %1217 = vmatpush1.bf16.msra.mxu0 %v1088
        %1218 = vmatprep.subr.bf16.mxu0 %v1091
        %1219 = vmatpush1.bf16.msra.mxu0 %v1090
        %1220 = vmatprep.subr.bf16.mxu0 %v1093
        %1221 = vmatpush1.bf16.msra.mxu0 %v1092
        %1222 = vmatprep.subr.bf16.mxu0 %v1095
        %1223 = vmatpush1.bf16.msra.mxu0 %v1094
        %1224 = vmatprep.subr.bf16.mxu0 %v1097
        %1225 = vmatpush1.bf16.msra.mxu0 %v1096
        %1226 = vmatprep.subr.bf16.mxu0 %v1099
        %1227 = vmatpush1.bf16.msra.mxu0 %v1098
        %1228 = vmatprep.subr.bf16.mxu0 %v1101
        %1229 = vmatpush1.bf16.msra.mxu0 %v1100
        %1230 = vmatprep.subr.bf16.mxu0 %v1103
        %1231 = vmatpush1.bf16.msra.mxu0 %v1102
        %1232 = vmatprep.subr.bf16.mxu0 %v1105
        %1233 = vmatpush1.bf16.msra.mxu0 %v1104
        %1234 = vmatprep.subr.bf16.mxu0 %v1107
        %1235 = vmatpush1.bf16.msra.mxu0 %v1106
        %1236 = vmatprep.subr.bf16.mxu0 %v1109
        %1237 = vmatpush1.bf16.msra.mxu0 %v1108
        %1238 = vmatprep.subr.bf16.mxu0 %v1111
        %1239 = vmatpush1.bf16.msra.mxu0 %v1110
        %1240 = vmatprep.subr.bf16.mxu0 %v1113
        %1241 = vmatpush1.bf16.msra.mxu0 %v1112
        %1242 = vmatprep.mubr.bf16.mxu0 %v763
        %1243 = vmatmul.mubr.bf16.gmra.mrb[0].mxu0 %v762
        %v1244 = vpop.f32.mrb[0].mxu0
        %v1245 = vadd.f32 0.0, %v1244
        %v1246 = vpop.f32.mrb[0].mxu0
        %v1247 = vadd.f32 0.0, %v1246
        %v1248 = vpop.f32.mrb[0].mxu0
        %v1249 = vadd.f32 0.0, %v1248
        %v1250 = vpop.f32.mrb[0].mxu0
        %v1251 = vadd.f32 0.0, %v1250
        %1252 = vmatprep.mubr.bf16.mxu0 %v767
        %1253 = vmatmul.mubr.bf16.gmra.mrb[0].mxu0 %v766
        %v1254 = vpop.f32.mrb[0].mxu0
        %v1255 = vadd.f32 0.0, %v1254
        %v1256 = vpop.f32.mrb[0].mxu0
        %v1257 = vadd.f32 0.0, %v1256
        %v1258 = vpop.f32.mrb[0].mxu0
        %v1259 = vadd.f32 0.0, %v1258
        %v1260 = vpop.f32.mrb[0].mxu0
        %v1261 = vadd.f32 0.0, %v1260
        %1262 = vmatprep.mubr.bf16.mxu0 %v771
        %1263 = vmatmul.mubr.bf16.gmra.mrb[0].mxu0 %v770
        %v1264 = vpop.f32.mrb[0].mxu0
        %v1265 = vadd.f32 0.0, %v1264
        %v1266 = vpop.f32.mrb[0].mxu0
        %v1267 = vadd.f32 0.0, %v1266
        %v1268 = vpop.f32.mrb[0].mxu0
        %v1269 = vadd.f32 0.0, %v1268
        %v1270 = vpop.f32.mrb[0].mxu0
        %v1271 = vadd.f32 0.0, %v1270
        %1272 = vmatprep.mubr.bf16.mxu0 %v775
        %1273 = vmatmul.mubr.bf16.gmra.mrb[0].mxu0 %v774
        %v1274 = vpop.f32.mrb[0].mxu0
        %v1275 = vadd.f32 0.0, %v1274
        %v1276 = vpop.f32.mrb[0].mxu0
        %v1277 = vadd.f32 0.0, %v1276
        %v1278 = vpop.f32.mrb[0].mxu0
        %v1279 = vadd.f32 0.0, %v1278
        %v1280 = vpop.f32.mrb[0].mxu0
        %v1281 = vadd.f32 0.0, %v1280
        %1282 = vmatprep.mubr.bf16.mxu0 %v779
        %1283 = vmatmul.mubr.bf16.gmra.mrb[0].mxu0 %v778
        %v1284 = vpop.f32.mrb[0].mxu0
        %v1285 = vadd.f32 0.0, %v1284
        %v1286 = vpop.f32.mrb[0].mxu0
        %v1287 = vadd.f32 0.0, %v1286
        %v1288 = vpop.f32.mrb[0].mxu0
        %v1289 = vadd.f32 0.0, %v1288
        %v1290 = vpop.f32.mrb[0].mxu0
        %v1291 = vadd.f32 0.0, %v1290
        %1292 = vmatprep.mubr.bf16.mxu0 %v783
        %1293 = vmatmul.mubr.bf16.gmra.mrb[0].mxu0 %v782
        %v1294 = vpop.f32.mrb[0].mxu0
        %v1295 = vadd.f32 0.0, %v1294
        %v1296 = vpop.f32.mrb[0].mxu0
        %v1297 = vadd.f32 0.0, %v1296
        %v1298 = vpop.f32.mrb[0].mxu0
        %v1299 = vadd.f32 0.0, %v1298
        %v1300 = vpop.f32.mrb[0].mxu0
        %v1301 = vadd.f32 0.0, %v1300
        %1302 = vmatprep.mubr.bf16.mxu0 %v787
        %1303 = vmatmul.mubr.bf16.gmra.mrb[0].mxu0 %v786
        %v1304 = vpop.f32.mrb[0].mxu0
        %v1305 = vadd.f32 0.0, %v1304
        %v1306 = vpop.f32.mrb[0].mxu0
        %v1307 = vadd.f32 0.0, %v1306
        %v1308 = vpop.f32.mrb[0].mxu0
        %v1309 = vadd.f32 0.0, %v1308
        %v1310 = vpop.f32.mrb[0].mxu0
        %v1311 = vadd.f32 0.0, %v1310
        %1312 = vmatprep.mubr.bf16.mxu0 %v791
        %1313 = vmatmul.mubr.bf16.gmra.mrb[0].mxu0 %v790
        %v1314 = vpop.f32.mrb[0].mxu0
        %v1315 = vadd.f32 0.0, %v1314
        %v1316 = vpop.f32.mrb[0].mxu0
        %v1317 = vadd.f32 0.0, %v1316
        %v1318 = vpop.f32.mrb[0].mxu0
        %v1319 = vadd.f32 0.0, %v1318
        %v1320 = vpop.f32.mrb[0].mxu0
        %v1321 = vadd.f32 0.0, %v1320
        %1322 = vmatprep.mubr.bf16.mxu0 %v795
        %1323 = vmatmul.mubr.bf16.gmra.mrb[0].mxu0 %v794
        %v1324 = vpop.f32.mrb[0].mxu0
        %v1325 = vadd.f32 0.0, %v1324
        %v1326 = vpop.f32.mrb[0].mxu0
        %v1327 = vadd.f32 0.0, %v1326
        %v1328 = vpop.f32.mrb[0].mxu0
        %v1329 = vadd.f32 0.0, %v1328
        %v1330 = vpop.f32.mrb[0].mxu0
        %v1331 = vadd.f32 0.0, %v1330
        %1332 = vmatprep.mubr.bf16.mxu0 %v799
        %1333 = vmatmul.mubr.bf16.gmra.mrb[0].mxu0 %v798
        %v1334 = vpop.f32.mrb[0].mxu0
        %v1335 = vadd.f32 0.0, %v1334
        %v1336 = vpop.f32.mrb[0].mxu0
        %v1337 = vadd.f32 0.0, %v1336
        %v1338 = vpop.f32.mrb[0].mxu0
        %v1339 = vadd.f32 0.0, %v1338
        %v1340 = vpop.f32.mrb[0].mxu0
        %v1341 = vadd.f32 0.0, %v1340
        %1342 = vmatprep.mubr.bf16.mxu0 %v803
        %1343 = vmatmul.mubr.bf16.gmra.mrb[0].mxu0 %v802
        %v1344 = vpop.f32.mrb[0].mxu0
        %v1345 = vadd.f32 0.0, %v1344
        %v1346 = vpop.f32.mrb[0].mxu0
        %v1347 = vadd.f32 0.0, %v1346
        %v1348 = vpop.f32.mrb[0].mxu0
        %v1349 = vadd.f32 0.0, %v1348
        %v1350 = vpop.f32.mrb[0].mxu0
        %v1351 = vadd.f32 0.0, %v1350
        %1352 = vmatprep.mubr.bf16.mxu0 %v807
        %1353 = vmatmul.mubr.bf16.gmra.mrb[0].mxu0 %v806
        %v1354 = vpop.f32.mrb[0].mxu0
        %v1355 = vadd.f32 0.0, %v1354
        %v1356 = vpop.f32.mrb[0].mxu0
        %v1357 = vadd.f32 0.0, %v1356
        %v1358 = vpop.f32.mrb[0].mxu0
        %v1359 = vadd.f32 0.0, %v1358
        %v1360 = vpop.f32.mrb[0].mxu0
        %v1361 = vadd.f32 0.0, %v1360
        %1362 = vmatprep.mubr.bf16.mxu0 %v811
        %1363 = vmatmul.mubr.bf16.gmra.mrb[0].mxu0 %v810
        %v1364 = vpop.f32.mrb[0].mxu0
        %v1365 = vadd.f32 0.0, %v1364
        %v1366 = vpop.f32.mrb[0].mxu0
        %v1367 = vadd.f32 0.0, %v1366
        %v1368 = vpop.f32.mrb[0].mxu0
        %v1369 = vadd.f32 0.0, %v1368
        %v1370 = vpop.f32.mrb[0].mxu0
        %v1371 = vadd.f32 0.0, %v1370
        %1372 = vmatprep.mubr.bf16.mxu0 %v815
        %1373 = vmatmul.mubr.bf16.gmra.mrb[0].mxu0 %v814
        %v1374 = vpop.f32.mrb[0].mxu0
        %v1375 = vadd.f32 0.0, %v1374
        %v1376 = vpop.f32.mrb[0].mxu0
        %v1377 = vadd.f32 0.0, %v1376
        %v1378 = vpop.f32.mrb[0].mxu0
        %v1379 = vadd.f32 0.0, %v1378
        %v1380 = vpop.f32.mrb[0].mxu0
        %v1381 = vadd.f32 0.0, %v1380
        %1382 = vmatprep.mubr.bf16.mxu0 %v819
        %1383 = vmatmul.mubr.bf16.gmra.mrb[0].mxu0 %v818
        %v1384 = vpop.f32.mrb[0].mxu0
        %v1385 = vadd.f32 0.0, %v1384
        %v1386 = vpop.f32.mrb[0].mxu0
        %v1387 = vadd.f32 0.0, %v1386
        %v1388 = vpop.f32.mrb[0].mxu0
        %v1389 = vadd.f32 0.0, %v1388
        %v1390 = vpop.f32.mrb[0].mxu0
        %v1391 = vadd.f32 0.0, %v1390
        %1392 = vmatprep.mubr.bf16.mxu0 %v823
        %1393 = vmatmul.mubr.bf16.gmra.mrb[0].mxu0 %v822
        %v1394 = vpop.f32.mrb[0].mxu0
        %v1395 = vadd.f32 0.0, %v1394
        %v1396 = vpop.f32.mrb[0].mxu0
        %v1397 = vadd.f32 0.0, %v1396
        %v1398 = vpop.f32.mrb[0].mxu0
        %v1399 = vadd.f32 0.0, %v1398
        %v1400 = vpop.f32.mrb[0].mxu0
        %v1401 = vadd.f32 0.0, %v1400
        %1402 = vdwg.mxu0
        %1403 = vmatprep.subr.bf16.mxu0 %v1115
        %1404 = vmatpush1.bf16.msra.mxu0 %v1114
        %1405 = vmatprep.subr.bf16.mxu0 %v1117
        %1406 = vmatpush1.bf16.msra.mxu0 %v1116
        %1407 = vmatprep.subr.bf16.mxu0 %v1119
        %1408 = vmatpush1.bf16.msra.mxu0 %v1118
        %1409 = vmatprep.subr.bf16.mxu0 %v1121
        %1410 = vmatpush1.bf16.msra.mxu0 %v1120
        %1411 = vmatprep.subr.bf16.mxu0 %v1123
        %1412 = vmatpush1.bf16.msra.mxu0 %v1122
        %1413 = vmatprep.subr.bf16.mxu0 %v1125
        %1414 = vmatpush1.bf16.msra.mxu0 %v1124
        %1415 = vmatprep.subr.bf16.mxu0 %v1127
        %1416 = vmatpush1.bf16.msra.mxu0 %v1126
        %1417 = vmatprep.subr.bf16.mxu0 %v1129
        %1418 = vmatpush1.bf16.msra.mxu0 %v1128
        %1419 = vmatprep.subr.bf16.mxu0 %v1131
        %1420 = vmatpush1.bf16.msra.mxu0 %v1130
        %1421 = vmatprep.subr.bf16.mxu0 %v1133
        %1422 = vmatpush1.bf16.msra.mxu0 %v1132
        %1423 = vmatprep.subr.bf16.mxu0 %v1135
        %1424 = vmatpush1.bf16.msra.mxu0 %v1134
        %1425 = vmatprep.subr.bf16.mxu0 %v1137
        %1426 = vmatpush1.bf16.msra.mxu0 %v1136
        %1427 = vmatprep.subr.bf16.mxu0 %v1139
        %1428 = vmatpush1.bf16.msra.mxu0 %v1138
        %1429 = vmatprep.subr.bf16.mxu0 %v1141
        %1430 = vmatpush1.bf16.msra.mxu0 %v1140
        %1431 = vmatprep.subr.bf16.mxu0 %v1143
        %1432 = vmatpush1.bf16.msra.mxu0 %v1142
        %1433 = vmatprep.subr.bf16.mxu0 %v1145
        %1434 = vmatpush1.bf16.msra.mxu0 %v1144
        %1435 = vmatprep.mubr.bf16.mxu0 %v765
        %1436 = vmatmul.mubr.bf16.gmra.mrb[0].mxu0 %v764
        %v1437 = vpop.f32.mrb[0].mxu0
        %v1438 = vadd.f32 %v1245, %v1437
        %v1439 = vpop.f32.mrb[0].mxu0
        %v1440 = vadd.f32 %v1247, %v1439
        %v1441 = vpop.f32.mrb[0].mxu0
        %v1442 = vadd.f32 %v1249, %v1441
        %v1443 = vpop.f32.mrb[0].mxu0
        %v1444 = vadd.f32 %v1251, %v1443
        %1445 = vmatprep.mubr.bf16.mxu0 %v769
        %1446 = vmatmul.mubr.bf16.gmra.mrb[0].mxu0 %v768
        %v1447 = vpop.f32.mrb[0].mxu0
        %v1448 = vadd.f32 %v1255, %v1447
        %v1449 = vpop.f32.mrb[0].mxu0
        %v1450 = vadd.f32 %v1257, %v1449
        %v1451 = vpop.f32.mrb[0].mxu0
        %v1452 = vadd.f32 %v1259, %v1451
        %v1453 = vpop.f32.mrb[0].mxu0
        %v1454 = vadd.f32 %v1261, %v1453
        %1455 = vmatprep.mubr.bf16.mxu0 %v773
        %1456 = vmatmul.mubr.bf16.gmra.mrb[0].mxu0 %v772
        %v1457 = vpop.f32.mrb[0].mxu0
        %v1458 = vadd.f32 %v1265, %v1457
        %v1459 = vpop.f32.mrb[0].mxu0
        %v1460 = vadd.f32 %v1267, %v1459
        %v1461 = vpop.f32.mrb[0].mxu0
        %v1462 = vadd.f32 %v1269, %v1461
        %v1463 = vpop.f32.mrb[0].mxu0
        %v1464 = vadd.f32 %v1271, %v1463
        %1465 = vmatprep.mubr.bf16.mxu0 %v777
        %1466 = vmatmul.mubr.bf16.gmra.mrb[0].mxu0 %v776
        %v1467 = vpop.f32.mrb[0].mxu0
        %v1468 = vadd.f32 %v1275, %v1467
        %v1469 = vpop.f32.mrb[0].mxu0
        %v1470 = vadd.f32 %v1277, %v1469
        %v1471 = vpop.f32.mrb[0].mxu0
        %v1472 = vadd.f32 %v1279, %v1471
        %v1473 = vpop.f32.mrb[0].mxu0
        %v1474 = vadd.f32 %v1281, %v1473
        %1475 = vmatprep.mubr.bf16.mxu0 %v781
        %1476 = vmatmul.mubr.bf16.gmra.mrb[0].mxu0 %v780
        %v1477 = vpop.f32.mrb[0].mxu0
        %v1478 = vadd.f32 %v1285, %v1477
        %v1479 = vpop.f32.mrb[0].mxu0
        %v1480 = vadd.f32 %v1287, %v1479
        %v1481 = vpop.f32.mrb[0].mxu0
        %v1482 = vadd.f32 %v1289, %v1481
        %v1483 = vpop.f32.mrb[0].mxu0
        %v1484 = vadd.f32 %v1291, %v1483
        %1485 = vmatprep.mubr.bf16.mxu0 %v785
        %1486 = vmatmul.mubr.bf16.gmra.mrb[0].mxu0 %v784
        %v1487 = vpop.f32.mrb[0].mxu0
        %v1488 = vadd.f32 %v1295, %v1487
        %v1489 = vpop.f32.mrb[0].mxu0
        %v1490 = vadd.f32 %v1297, %v1489
        %v1491 = vpop.f32.mrb[0].mxu0
        %v1492 = vadd.f32 %v1299, %v1491
        %v1493 = vpop.f32.mrb[0].mxu0
        %v1494 = vadd.f32 %v1301, %v1493
        %1495 = vmatprep.mubr.bf16.mxu0 %v789
        %1496 = vmatmul.mubr.bf16.gmra.mrb[0].mxu0 %v788
        %v1497 = vpop.f32.mrb[0].mxu0
        %v1498 = vadd.f32 %v1305, %v1497
        %v1499 = vpop.f32.mrb[0].mxu0
        %v1500 = vadd.f32 %v1307, %v1499
        %v1501 = vpop.f32.mrb[0].mxu0
        %v1502 = vadd.f32 %v1309, %v1501
        %v1503 = vpop.f32.mrb[0].mxu0
        %v1504 = vadd.f32 %v1311, %v1503
        %1505 = vmatprep.mubr.bf16.mxu0 %v793
        %1506 = vmatmul.mubr.bf16.gmra.mrb[0].mxu0 %v792
        %v1507 = vpop.f32.mrb[0].mxu0
        %v1508 = vadd.f32 %v1315, %v1507
        %v1509 = vpop.f32.mrb[0].mxu0
        %v1510 = vadd.f32 %v1317, %v1509
        %v1511 = vpop.f32.mrb[0].mxu0
        %v1512 = vadd.f32 %v1319, %v1511
        %v1513 = vpop.f32.mrb[0].mxu0
        %v1514 = vadd.f32 %v1321, %v1513
        %1515 = vmatprep.mubr.bf16.mxu0 %v797
        %1516 = vmatmul.mubr.bf16.gmra.mrb[0].mxu0 %v796
        %v1517 = vpop.f32.mrb[0].mxu0
        %v1518 = vadd.f32 %v1325, %v1517
        %v1519 = vpop.f32.mrb[0].mxu0
        %v1520 = vadd.f32 %v1327, %v1519
        %v1521 = vpop.f32.mrb[0].mxu0
        %v1522 = vadd.f32 %v1329, %v1521
        %v1523 = vpop.f32.mrb[0].mxu0
        %v1524 = vadd.f32 %v1331, %v1523
        %1525 = vmatprep.mubr.bf16.mxu0 %v801
        %1526 = vmatmul.mubr.bf16.gmra.mrb[0].mxu0 %v800
        %v1527 = vpop.f32.mrb[0].mxu0
        %v1528 = vadd.f32 %v1335, %v1527
        %v1529 = vpop.f32.mrb[0].mxu0
        %v1530 = vadd.f32 %v1337, %v1529
        %v1531 = vpop.f32.mrb[0].mxu0
        %v1532 = vadd.f32 %v1339, %v1531
        %v1533 = vpop.f32.mrb[0].mxu0
        %v1534 = vadd.f32 %v1341, %v1533
        %1535 = vmatprep.mubr.bf16.mxu0 %v805
        %1536 = vmatmul.mubr.bf16.gmra.mrb[0].mxu0 %v804
        %v1537 = vpop.f32.mrb[0].mxu0
        %v1538 = vadd.f32 %v1345, %v1537
        %v1539 = vpop.f32.mrb[0].mxu0
        %v1540 = vadd.f32 %v1347, %v1539
        %v1541 = vpop.f32.mrb[0].mxu0
        %v1542 = vadd.f32 %v1349, %v1541
        %v1543 = vpop.f32.mrb[0].mxu0
        %v1544 = vadd.f32 %v1351, %v1543
        %1545 = vmatprep.mubr.bf16.mxu0 %v809
        %1546 = vmatmul.mubr.bf16.gmra.mrb[0].mxu0 %v808
        %v1547 = vpop.f32.mrb[0].mxu0
        %v1548 = vadd.f32 %v1355, %v1547
        %v1549 = vpop.f32.mrb[0].mxu0
        %v1550 = vadd.f32 %v1357, %v1549
        %v1551 = vpop.f32.mrb[0].mxu0
        %v1552 = vadd.f32 %v1359, %v1551
        %v1553 = vpop.f32.mrb[0].mxu0
        %v1554 = vadd.f32 %v1361, %v1553
        %1555 = vmatprep.mubr.bf16.mxu0 %v813
        %1556 = vmatmul.mubr.bf16.gmra.mrb[0].mxu0 %v812
        %v1557 = vpop.f32.mrb[0].mxu0
        %v1558 = vadd.f32 %v1365, %v1557
        %v1559 = vpop.f32.mrb[0].mxu0
        %v1560 = vadd.f32 %v1367, %v1559
        %v1561 = vpop.f32.mrb[0].mxu0
        %v1562 = vadd.f32 %v1369, %v1561
        %v1563 = vpop.f32.mrb[0].mxu0
        %v1564 = vadd.f32 %v1371, %v1563
        %1565 = vmatprep.mubr.bf16.mxu0 %v817
        %1566 = vmatmul.mubr.bf16.gmra.mrb[0].mxu0 %v816
        %v1567 = vpop.f32.mrb[0].mxu0
        %v1568 = vadd.f32 %v1375, %v1567
        %v1569 = vpop.f32.mrb[0].mxu0
        %v1570 = vadd.f32 %v1377, %v1569
        %v1571 = vpop.f32.mrb[0].mxu0
        %v1572 = vadd.f32 %v1379, %v1571
        %v1573 = vpop.f32.mrb[0].mxu0
        %v1574 = vadd.f32 %v1381, %v1573
        %1575 = vmatprep.mubr.bf16.mxu0 %v821
        %1576 = vmatmul.mubr.bf16.gmra.mrb[0].mxu0 %v820
        %v1577 = vpop.f32.mrb[0].mxu0
        %v1578 = vadd.f32 %v1385, %v1577
        %v1579 = vpop.f32.mrb[0].mxu0
        %v1580 = vadd.f32 %v1387, %v1579
        %v1581 = vpop.f32.mrb[0].mxu0
        %v1582 = vadd.f32 %v1389, %v1581
        %v1583 = vpop.f32.mrb[0].mxu0
        %v1584 = vadd.f32 %v1391, %v1583
        %1585 = vmatprep.mubr.bf16.mxu0 %v825
        %1586 = vmatmul.mubr.bf16.gmra.mrb[0].mxu0 %v824
        %v1587 = vpop.f32.mrb[0].mxu0
        %v1588 = vadd.f32 %v1395, %v1587
        %v1589 = vpop.f32.mrb[0].mxu0
        %v1590 = vadd.f32 %v1397, %v1589
        %v1591 = vpop.f32.mrb[0].mxu0
        %v1592 = vadd.f32 %v1399, %v1591
        %v1593 = vpop.f32.mrb[0].mxu0
        %v1594 = vadd.f32 %v1401, %v1593
        %1595 = vdwg.mxu0
        %v1596 = vadd.f32 %v378, %v1438
        %v1597 = vadd.f32 %v379, %v1440
        %v1598 = vadd.f32 %v380, %v1442
        %v1599 = vadd.f32 %v381, %v1444
        %v1600 = vadd.f32 %v382, %v1448
        %v1601 = vadd.f32 %v383, %v1450
        %v1602 = vadd.f32 %v384, %v1452
        %v1603 = vadd.f32 %v385, %v1454
        %v1604 = vadd.f32 %v386, %v1458
        %v1605 = vadd.f32 %v387, %v1460
        %v1606 = vadd.f32 %v388, %v1462
        %v1607 = vadd.f32 %v389, %v1464
        %v1608 = vadd.f32 %v390, %v1468
        %v1609 = vadd.f32 %v391, %v1470
        %v1610 = vadd.f32 %v392, %v1472
        %v1611 = vadd.f32 %v393, %v1474
        %v1612 = vadd.f32 %v394, %v1478
        %v1613 = vadd.f32 %v395, %v1480
        %v1614 = vadd.f32 %v396, %v1482
        %v1615 = vadd.f32 %v397, %v1484
        %v1616 = vadd.f32 %v398, %v1488
        %v1617 = vadd.f32 %v399, %v1490
        %v1618 = vadd.f32 %v400, %v1492
        %v1619 = vadd.f32 %v401, %v1494
        %v1620 = vadd.f32 %v402, %v1498
        %v1621 = vadd.f32 %v403, %v1500
        %v1622 = vadd.f32 %v404, %v1502
        %v1623 = vadd.f32 %v405, %v1504
        %v1624 = vadd.f32 %v406, %v1508
        %v1625 = vadd.f32 %v407, %v1510
        %v1626 = vadd.f32 %v408, %v1512
        %v1627 = vadd.f32 %v409, %v1514
        %v1628 = vadd.f32 %v410, %v1518
        %v1629 = vadd.f32 %v411, %v1520
        %v1630 = vadd.f32 %v412, %v1522
        %v1631 = vadd.f32 %v413, %v1524
        %v1632 = vadd.f32 %v414, %v1528
        %v1633 = vadd.f32 %v415, %v1530
        %v1634 = vadd.f32 %v416, %v1532
        %v1635 = vadd.f32 %v417, %v1534
        %v1636 = vadd.f32 %v418, %v1538
        %v1637 = vadd.f32 %v419, %v1540
        %v1638 = vadd.f32 %v420, %v1542
        %v1639 = vadd.f32 %v421, %v1544
        %v1640 = vadd.f32 %v422, %v1548
        %v1641 = vadd.f32 %v423, %v1550
        %v1642 = vadd.f32 %v424, %v1552
        %v1643 = vadd.f32 %v425, %v1554
        %v1644 = vadd.f32 %v426, %v1558
        %v1645 = vadd.f32 %v427, %v1560
        %v1646 = vadd.f32 %v428, %v1562
        %v1647 = vadd.f32 %v429, %v1564
        %v1648 = vadd.f32 %v430, %v1568
        %v1649 = vadd.f32 %v431, %v1570
        %v1650 = vadd.f32 %v432, %v1572
        %v1651 = vadd.f32 %v433, %v1574
        %v1652 = vadd.f32 %v434, %v1578
        %v1653 = vadd.f32 %v435, %v1580
        %v1654 = vadd.f32 %v436, %v1582
        %v1655 = vadd.f32 %v437, %v1584
        %v1656 = vadd.f32 %v438, %v1588
        %v1657 = vadd.f32 %v439, %v1590
        %v1658 = vadd.f32 %v440, %v1592
        %v1659 = vadd.f32 %v441, %v1594
        %1660 = vst [vmem:[#allocation2] sm:$0xff] %v1596
        %1661 = vst [vmem:[#allocation2 + $0x8] sm:$0xff] %v1597
        %1662 = vst [vmem:[#allocation2 + $0x10] sm:$0xff] %v1598
        %1663 = vst [vmem:[#allocation2 + $0x18] sm:$0xff] %v1599
        %1664 = vst [vmem:[#allocation2 + $0x20] sm:$0xff] %v1600
        %1665 = vst [vmem:[#allocation2 + $0x28] sm:$0xff] %v1601
        %1666 = vst [vmem:[#allocation2 + $0x30] sm:$0xff] %v1602
        %1667 = vst [vmem:[#allocation2 + $0x38] sm:$0xff] %v1603
        %1668 = vst [vmem:[#allocation2 + $0x40] sm:$0xff] %v1604
        %1669 = vst [vmem:[#allocation2 + $0x48] sm:$0xff] %v1605
        %1670 = vst [vmem:[#allocation2 + $0x50] sm:$0xff] %v1606
        %1671 = vst [vmem:[#allocation2 + $0x58] sm:$0xff] %v1607
        %1672 = vst [vmem:[#allocation2 + $0x60] sm:$0xff] %v1608
        %1673 = vst [vmem:[#allocation2 + $0x68] sm:$0xff] %v1609
        %1674 = vst [vmem:[#allocation2 + $0x70] sm:$0xff] %v1610
        %1675 = vst [vmem:[#allocation2 + $0x78] sm:$0xff] %v1611
        %1676 = vst [vmem:[#allocation2 + $0x80] sm:$0xff] %v1612
        %1677 = vst [vmem:[#allocation2 + $0x88] sm:$0xff] %v1613
        %1678 = vst [vmem:[#allocation2 + $0x90] sm:$0xff] %v1614
        %1679 = vst [vmem:[#allocation2 + $0x98] sm:$0xff] %v1615
        %1680 = vst [vmem:[#allocation2 + $0xa0] sm:$0xff] %v1616
        %1681 = vst [vmem:[#allocation2 + $0xa8] sm:$0xff] %v1617
        %1682 = vst [vmem:[#allocation2 + $0xb0] sm:$0xff] %v1618
        %1683 = vst [vmem:[#allocation2 + $0xb8] sm:$0xff] %v1619
        %1684 = vst [vmem:[#allocation2 + $0xc0] sm:$0xff] %v1620
        %1685 = vst [vmem:[#allocation2 + $0xc8] sm:$0xff] %v1621
        %1686 = vst [vmem:[#allocation2 + $0xd0] sm:$0xff] %v1622
        %1687 = vst [vmem:[#allocation2 + $0xd8] sm:$0xff] %v1623
        %1688 = vst [vmem:[#allocation2 + $0xe0] sm:$0xff] %v1624
        %1689 = vst [vmem:[#allocation2 + $0xe8] sm:$0xff] %v1625
        %1690 = vst [vmem:[#allocation2 + $0xf0] sm:$0xff] %v1626
        %1691 = vst [vmem:[#allocation2 + $0xf8] sm:$0xff] %v1627
        %1692 = vst [vmem:[#allocation2 + $0x100] sm:$0xff] %v1628
        %1693 = vst [vmem:[#allocation2 + $0x108] sm:$0xff] %v1629
        %1694 = vst [vmem:[#allocation2 + $0x110] sm:$0xff] %v1630
        %1695 = vst [vmem:[#allocation2 + $0x118] sm:$0xff] %v1631
        %1696 = vst [vmem:[#allocation2 + $0x120] sm:$0xff] %v1632
        %1697 = vst [vmem:[#allocation2 + $0x128] sm:$0xff] %v1633
        %1698 = vst [vmem:[#allocation2 + $0x130] sm:$0xff] %v1634
        %1699 = vst [vmem:[#allocation2 + $0x138] sm:$0xff] %v1635
        %1700 = vst [vmem:[#allocation2 + $0x140] sm:$0xff] %v1636
        %1701 = vst [vmem:[#allocation2 + $0x148] sm:$0xff] %v1637
        %1702 = vst [vmem:[#allocation2 + $0x150] sm:$0xff] %v1638
        %1703 = vst [vmem:[#allocation2 + $0x158] sm:$0xff] %v1639
        %1704 = vst [vmem:[#allocation2 + $0x160] sm:$0xff] %v1640
        %1705 = vst [vmem:[#allocation2 + $0x168] sm:$0xff] %v1641
        %1706 = vst [vmem:[#allocation2 + $0x170] sm:$0xff] %v1642
        %1707 = vst [vmem:[#allocation2 + $0x178] sm:$0xff] %v1643
        %1708 = vst [vmem:[#allocation2 + $0x180] sm:$0xff] %v1644
        %1709 = vst [vmem:[#allocation2 + $0x188] sm:$0xff] %v1645
        %1710 = vst [vmem:[#allocation2 + $0x190] sm:$0xff] %v1646
        %1711 = vst [vmem:[#allocation2 + $0x198] sm:$0xff] %v1647
        %1712 = vst [vmem:[#allocation2 + $0x1a0] sm:$0xff] %v1648
        %1713 = vst [vmem:[#allocation2 + $0x1a8] sm:$0xff] %v1649
        %1714 = vst [vmem:[#allocation2 + $0x1b0] sm:$0xff] %v1650
        %1715 = vst [vmem:[#allocation2 + $0x1b8] sm:$0xff] %v1651
        %1716 = vst [vmem:[#allocation2 + $0x1c0] sm:$0xff] %v1652
        %1717 = vst [vmem:[#allocation2 + $0x1c8] sm:$0xff] %v1653
        %1718 = vst [vmem:[#allocation2 + $0x1d0] sm:$0xff] %v1654
        %1719 = vst [vmem:[#allocation2 + $0x1d8] sm:$0xff] %v1655
        %1720 = vst [vmem:[#allocation2 + $0x1e0] sm:$0xff] %v1656
        %1721 = vst [vmem:[#allocation2 + $0x1e8] sm:$0xff] %v1657
        %1722 = vst [vmem:[#allocation2 + $0x1f0] sm:$0xff] %v1658
        %1723 = vst [vmem:[#allocation2 + $0x1f8] sm:$0xff] %v1659
        %v1724 = vlaneseq
        %v1725 = vshrl.u32 %v1724, 7
        %v1726 = vadd.s32 %v1725, 8
        %v1727 = vadd.s32 %v1725, 16
        %v1728 = vadd.s32 %v1725, 24
        %v1729 = vadd.s32 %v1725, 32
        %v1730 = vadd.s32 %v1725, 40
        %v1731 = vadd.s32 %v1725, 48
        %v1732 = vadd.s32 %v1725, 56
        %v1733 = vadd.s32 %v1725, 64
        %v1734 = vadd.s32 %v1725, 72
        %v1735 = vadd.s32 %v1725, 80
        %v1736 = vadd.s32 %v1725, 88
        %v1737 = vadd.s32 %v1725, 96
        %v1738 = vadd.s32 %v1725, 104
        %v1739 = vadd.s32 %v1725, 112
        %v1740 = vadd.s32 %v1725, 120
        %v1741 = vadd.s32 %v1725, 128
        %v1742 = vadd.s32 %v1725, 136
        %v1743 = vadd.s32 %v1725, 144
        %v1744 = vadd.s32 %v1725, 152
        %v1745 = vadd.s32 %v1725, 160
        %v1746 = vadd.s32 %v1725, 168
        %v1747 = vadd.s32 %v1725, 176
        %v1748 = vadd.s32 %v1725, 184
        %v1749 = vadd.s32 %v1725, 192
        %v1750 = vadd.s32 %v1725, 200
        %v1751 = vadd.s32 %v1725, 208
        %v1752 = vadd.s32 %v1725, 216
        %v1753 = vadd.s32 %v1725, 224
        %v1754 = vadd.s32 %v1725, 232
        %v1755 = vadd.s32 %v1725, 240
        %v1756 = vadd.s32 %v1725, 248
        %s1757 = smul.u32 %s28, 256
        %v1758 = vstv %s1757
        %v1759 = vadd.s32 %v1725, %v1758
        %v1760 = vadd.s32 %v1726, %v1758
        %v1761 = vadd.s32 %v1727, %v1758
        %v1762 = vadd.s32 %v1728, %v1758
        %v1763 = vadd.s32 %v1729, %v1758
        %v1764 = vadd.s32 %v1730, %v1758
        %v1765 = vadd.s32 %v1731, %v1758
        %v1766 = vadd.s32 %v1732, %v1758
        %v1767 = vadd.s32 %v1733, %v1758
        %v1768 = vadd.s32 %v1734, %v1758
        %v1769 = vadd.s32 %v1735, %v1758
        %v1770 = vadd.s32 %v1736, %v1758
        %v1771 = vadd.s32 %v1737, %v1758
        %v1772 = vadd.s32 %v1738, %v1758
        %v1773 = vadd.s32 %v1739, %v1758
        %v1774 = vadd.s32 %v1740, %v1758
        %v1775 = vadd.s32 %v1741, %v1758
        %v1776 = vadd.s32 %v1742, %v1758
        %v1777 = vadd.s32 %v1743, %v1758
        %v1778 = vadd.s32 %v1744, %v1758
        %v1779 = vadd.s32 %v1745, %v1758
        %v1780 = vadd.s32 %v1746, %v1758
        %v1781 = vadd.s32 %v1747, %v1758
        %v1782 = vadd.s32 %v1748, %v1758
        %v1783 = vadd.s32 %v1749, %v1758
        %v1784 = vadd.s32 %v1750, %v1758
        %v1785 = vadd.s32 %v1751, %v1758
        %v1786 = vadd.s32 %v1752, %v1758
        %v1787 = vadd.s32 %v1753, %v1758
        %v1788 = vadd.s32 %v1754, %v1758
        %v1789 = vadd.s32 %v1755, %v1758
        %v1790 = vadd.s32 %v1756, %v1758
        %v1791 = vlaneseq
        %v1792 = vand.u32 %v1791, 127
        %v1793 = vadd.s32 %v1792, 128
        %s1794 = smul.u32 %s29, 256
        %v1795 = vstv %s1794
        %v1796 = vadd.s32 %v1792, %v1795
        %v1797 = vadd.s32 %v1793, %v1795
        %vm1798 = vcmp.ne.s32.totalorder %v1759, %v1796
        %vm1799 = vcmp.ne.s32.totalorder %v1759, %v1797
        %vm1800 = vcmp.ne.s32.totalorder %v1760, %v1796
        %vm1801 = vcmp.ne.s32.totalorder %v1760, %v1797
        %vm1802 = vcmp.ne.s32.totalorder %v1761, %v1796
        %vm1803 = vcmp.ne.s32.totalorder %v1761, %v1797
        %vm1804 = vcmp.ne.s32.totalorder %v1762, %v1796
        %vm1805 = vcmp.ne.s32.totalorder %v1762, %v1797
        %vm1806 = vcmp.ne.s32.totalorder %v1763, %v1796
        %vm1807 = vcmp.ne.s32.totalorder %v1763, %v1797
        %vm1808 = vcmp.ne.s32.totalorder %v1764, %v1796
        %vm1809 = vcmp.ne.s32.totalorder %v1764, %v1797
        %vm1810 = vcmp.ne.s32.totalorder %v1765, %v1796
        %vm1811 = vcmp.ne.s32.totalorder %v1765, %v1797
        %vm1812 = vcmp.ne.s32.totalorder %v1766, %v1796
        %vm1813 = vcmp.ne.s32.totalorder %v1766, %v1797
        %vm1814 = vcmp.ne.s32.totalorder %v1767, %v1796
        %vm1815 = vcmp.ne.s32.totalorder %v1767, %v1797
        %vm1816 = vcmp.ne.s32.totalorder %v1768, %v1796
        %vm1817 = vcmp.ne.s32.totalorder %v1768, %v1797
        %vm1818 = vcmp.ne.s32.totalorder %v1769, %v1796
        %vm1819 = vcmp.ne.s32.totalorder %v1769, %v1797
        %vm1820 = vcmp.ne.s32.totalorder %v1770, %v1796
        %vm1821 = vcmp.ne.s32.totalorder %v1770, %v1797
        %vm1822 = vcmp.ne.s32.totalorder %v1771, %v1796
        %vm1823 = vcmp.ne.s32.totalorder %v1771, %v1797
        %vm1824 = vcmp.ne.s32.totalorder %v1772, %v1796
        %vm1825 = vcmp.ne.s32.totalorder %v1772, %v1797
        %vm1826 = vcmp.ne.s32.totalorder %v1773, %v1796
        %vm1827 = vcmp.ne.s32.totalorder %v1773, %v1797
        %vm1828 = vcmp.ne.s32.totalorder %v1774, %v1796
        %vm1829 = vcmp.ne.s32.totalorder %v1774, %v1797
        %vm1830 = vcmp.ne.s32.totalorder %v1775, %v1796
        %vm1831 = vcmp.ne.s32.totalorder %v1775, %v1797
        %vm1832 = vcmp.ne.s32.totalorder %v1776, %v1796
        %vm1833 = vcmp.ne.s32.totalorder %v1776, %v1797
        %vm1834 = vcmp.ne.s32.totalorder %v1777, %v1796
        %vm1835 = vcmp.ne.s32.totalorder %v1777, %v1797
        %vm1836 = vcmp.ne.s32.totalorder %v1778, %v1796
        %vm1837 = vcmp.ne.s32.totalorder %v1778, %v1797
        %vm1838 = vcmp.ne.s32.totalorder %v1779, %v1796
        %vm1839 = vcmp.ne.s32.totalorder %v1779, %v1797
        %vm1840 = vcmp.ne.s32.totalorder %v1780, %v1796
        %vm1841 = vcmp.ne.s32.totalorder %v1780, %v1797
        %vm1842 = vcmp.ne.s32.totalorder %v1781, %v1796
        %vm1843 = vcmp.ne.s32.totalorder %v1781, %v1797
        %vm1844 = vcmp.ne.s32.totalorder %v1782, %v1796
        %vm1845 = vcmp.ne.s32.totalorder %v1782, %v1797
        %vm1846 = vcmp.ne.s32.totalorder %v1783, %v1796
        %vm1847 = vcmp.ne.s32.totalorder %v1783, %v1797
        %vm1848 = vcmp.ne.s32.totalorder %v1784, %v1796
        %vm1849 = vcmp.ne.s32.totalorder %v1784, %v1797
        %vm1850 = vcmp.ne.s32.totalorder %v1785, %v1796
        %vm1851 = vcmp.ne.s32.totalorder %v1785, %v1797
        %vm1852 = vcmp.ne.s32.totalorder %v1786, %v1796
        %vm1853 = vcmp.ne.s32.totalorder %v1786, %v1797
        %vm1854 = vcmp.ne.s32.totalorder %v1787, %v1796
        %vm1855 = vcmp.ne.s32.totalorder %v1787, %v1797
        %vm1856 = vcmp.ne.s32.totalorder %v1788, %v1796
        %vm1857 = vcmp.ne.s32.totalorder %v1788, %v1797
        %vm1858 = vcmp.ne.s32.totalorder %v1789, %v1796
        %vm1859 = vcmp.ne.s32.totalorder %v1789, %v1797
        %vm1860 = vcmp.ne.s32.totalorder %v1790, %v1796
        %vm1861 = vcmp.ne.s32.totalorder %v1790, %v1797
        // Predicated region
        $region49: #{tpu_custom_call.1} parent=31 // pred_check
          %p1862 = pneg %p310
        $region50: #{tpu_custom_call.1} parent=31 // pred_check_branch
          %1864 = sbr.rel (%p1862) target = $region52
        $region51: #{tpu_custom_call.1} parent=31 // pred_region
          %v1865 = vld [vmem:[#allocation2] sm:$0xff]
          %v1866 = vld [vmem:[#allocation2 + $0x8] sm:$0xff]
          %v1867 = vld [vmem:[#allocation2 + $0x10] sm:$0xff]
          %v1868 = vld [vmem:[#allocation2 + $0x18] sm:$0xff]
          %v1869 = vld [vmem:[#allocation2 + $0x20] sm:$0xff]
          %v1870 = vld [vmem:[#allocation2 + $0x28] sm:$0xff]
          %v1871 = vld [vmem:[#allocation2 + $0x30] sm:$0xff]
          %v1872 = vld [vmem:[#allocation2 + $0x38] sm:$0xff]
          %v1873 = vld [vmem:[#allocation2 + $0x40] sm:$0xff]
          %v1874 = vld [vmem:[#allocation2 + $0x48] sm:$0xff]
          %v1875 = vld [vmem:[#allocation2 + $0x50] sm:$0xff]
          %v1876 = vld [vmem:[#allocation2 + $0x58] sm:$0xff]
          %v1877 = vld [vmem:[#allocation2 + $0x60] sm:$0xff]
          %v1878 = vld [vmem:[#allocation2 + $0x68] sm:$0xff]
          %v1879 = vld [vmem:[#allocation2 + $0x70] sm:$0xff]
          %v1880 = vld [vmem:[#allocation2 + $0x78] sm:$0xff]
          %v1881 = vld [vmem:[#allocation2 + $0x80] sm:$0xff]
          %v1882 = vld [vmem:[#allocation2 + $0x88] sm:$0xff]
          %v1883 = vld [vmem:[#allocation2 + $0x90] sm:$0xff]
          %v1884 = vld [vmem:[#allocation2 + $0x98] sm:$0xff]
          %v1885 = vld [vmem:[#allocation2 + $0xa0] sm:$0xff]
          %v1886 = vld [vmem:[#allocation2 + $0xa8] sm:$0xff]
          %v1887 = vld [vmem:[#allocation2 + $0xb0] sm:$0xff]
          %v1888 = vld [vmem:[#allocation2 + $0xb8] sm:$0xff]
          %v1889 = vld [vmem:[#allocation2 + $0xc0] sm:$0xff]
          %v1890 = vld [vmem:[#allocation2 + $0xc8] sm:$0xff]
          %v1891 = vld [vmem:[#allocation2 + $0xd0] sm:$0xff]
          %v1892 = vld [vmem:[#allocation2 + $0xd8] sm:$0xff]
          %v1893 = vld [vmem:[#allocation2 + $0xe0] sm:$0xff]
          %v1894 = vld [vmem:[#allocation2 + $0xe8] sm:$0xff]
          %v1895 = vld [vmem:[#allocation2 + $0xf0] sm:$0xff]
          %v1896 = vld [vmem:[#allocation2 + $0xf8] sm:$0xff]
          %v1897 = vld [vmem:[#allocation2 + $0x100] sm:$0xff]
          %v1898 = vld [vmem:[#allocation2 + $0x108] sm:$0xff]
          %v1899 = vld [vmem:[#allocation2 + $0x110] sm:$0xff]
          %v1900 = vld [vmem:[#allocation2 + $0x118] sm:$0xff]
          %v1901 = vld [vmem:[#allocation2 + $0x120] sm:$0xff]
          %v1902 = vld [vmem:[#allocation2 + $0x128] sm:$0xff]
          %v1903 = vld [vmem:[#allocation2 + $0x130] sm:$0xff]
          %v1904 = vld [vmem:[#allocation2 + $0x138] sm:$0xff]
          %v1905 = vld [vmem:[#allocation2 + $0x140] sm:$0xff]
          %v1906 = vld [vmem:[#allocation2 + $0x148] sm:$0xff]
          %v1907 = vld [vmem:[#allocation2 + $0x150] sm:$0xff]
          %v1908 = vld [vmem:[#allocation2 + $0x158] sm:$0xff]
          %v1909 = vld [vmem:[#allocation2 + $0x160] sm:$0xff]
          %v1910 = vld [vmem:[#allocation2 + $0x168] sm:$0xff]
          %v1911 = vld [vmem:[#allocation2 + $0x170] sm:$0xff]
          %v1912 = vld [vmem:[#allocation2 + $0x178] sm:$0xff]
          %v1913 = vld [vmem:[#allocation2 + $0x180] sm:$0xff]
          %v1914 = vld [vmem:[#allocation2 + $0x188] sm:$0xff]
          %v1915 = vld [vmem:[#allocation2 + $0x190] sm:$0xff]
          %v1916 = vld [vmem:[#allocation2 + $0x198] sm:$0xff]
          %v1917 = vld [vmem:[#allocation2 + $0x1a0] sm:$0xff]
          %v1918 = vld [vmem:[#allocation2 + $0x1a8] sm:$0xff]
          %v1919 = vld [vmem:[#allocation2 + $0x1b0] sm:$0xff]
          %v1920 = vld [vmem:[#allocation2 + $0x1b8] sm:$0xff]
          %v1921 = vld [vmem:[#allocation2 + $0x1c0] sm:$0xff]
          %v1922 = vld [vmem:[#allocation2 + $0x1c8] sm:$0xff]
          %v1923 = vld [vmem:[#allocation2 + $0x1d0] sm:$0xff]
          %v1924 = vld [vmem:[#allocation2 + $0x1d8] sm:$0xff]
          %v1925 = vld [vmem:[#allocation2 + $0x1e0] sm:$0xff]
          %v1926 = vld [vmem:[#allocation2 + $0x1e8] sm:$0xff]
          %v1927 = vld [vmem:[#allocation2 + $0x1f0] sm:$0xff]
          %v1928 = vld [vmem:[#allocation2 + $0x1f8] sm:$0xff]
          %vm1929 = vcmp.gt.f32.partialorder %v1865, 0.5
          %vm1930 = vcmp.gt.f32.partialorder %v1866, 0.5
          %vm1931 = vcmp.gt.f32.partialorder %v1867, 0.5
          %vm1932 = vcmp.gt.f32.partialorder %v1868, 0.5
          %vm1933 = vcmp.gt.f32.partialorder %v1869, 0.5
          %vm1934 = vcmp.gt.f32.partialorder %v1870, 0.5
          %vm1935 = vcmp.gt.f32.partialorder %v1871, 0.5
          %vm1936 = vcmp.gt.f32.partialorder %v1872, 0.5
          %vm1937 = vcmp.gt.f32.partialorder %v1873, 0.5
          %vm1938 = vcmp.gt.f32.partialorder %v1874, 0.5
          %vm1939 = vcmp.gt.f32.partialorder %v1875, 0.5
          %vm1940 = vcmp.gt.f32.partialorder %v1876, 0.5
          %vm1941 = vcmp.gt.f32.partialorder %v1877, 0.5
          %vm1942 = vcmp.gt.f32.partialorder %v1878, 0.5
          %vm1943 = vcmp.gt.f32.partialorder %v1879, 0.5
          %vm1944 = vcmp.gt.f32.partialorder %v1880, 0.5
          %vm1945 = vcmp.gt.f32.partialorder %v1881, 0.5
          %vm1946 = vcmp.gt.f32.partialorder %v1882, 0.5
          %vm1947 = vcmp.gt.f32.partialorder %v1883, 0.5
          %vm1948 = vcmp.gt.f32.partialorder %v1884, 0.5
          %vm1949 = vcmp.gt.f32.partialorder %v1885, 0.5
          %vm1950 = vcmp.gt.f32.partialorder %v1886, 0.5
          %vm1951 = vcmp.gt.f32.partialorder %v1887, 0.5
          %vm1952 = vcmp.gt.f32.partialorder %v1888, 0.5
          %vm1953 = vcmp.gt.f32.partialorder %v1889, 0.5
          %vm1954 = vcmp.gt.f32.partialorder %v1890, 0.5
          %vm1955 = vcmp.gt.f32.partialorder %v1891, 0.5
          %vm1956 = vcmp.gt.f32.partialorder %v1892, 0.5
          %vm1957 = vcmp.gt.f32.partialorder %v1893, 0.5
          %vm1958 = vcmp.gt.f32.partialorder %v1894, 0.5
          %vm1959 = vcmp.gt.f32.partialorder %v1895, 0.5
          %vm1960 = vcmp.gt.f32.partialorder %v1896, 0.5
          %vm1961 = vcmp.gt.f32.partialorder %v1897, 0.5
          %vm1962 = vcmp.gt.f32.partialorder %v1898, 0.5
          %vm1963 = vcmp.gt.f32.partialorder %v1899, 0.5
          %vm1964 = vcmp.gt.f32.partialorder %v1900, 0.5
          %vm1965 = vcmp.gt.f32.partialorder %v1901, 0.5
          %vm1966 = vcmp.gt.f32.partialorder %v1902, 0.5
          %vm1967 = vcmp.gt.f32.partialorder %v1903, 0.5
          %vm1968 = vcmp.gt.f32.partialorder %v1904, 0.5
          %vm1969 = vcmp.gt.f32.partialorder %v1905, 0.5
          %vm1970 = vcmp.gt.f32.partialorder %v1906, 0.5
          %vm1971 = vcmp.gt.f32.partialorder %v1907, 0.5
          %vm1972 = vcmp.gt.f32.partialorder %v1908, 0.5
          %vm1973 = vcmp.gt.f32.partialorder %v1909, 0.5
          %vm1974 = vcmp.gt.f32.partialorder %v1910, 0.5
          %vm1975 = vcmp.gt.f32.partialorder %v1911, 0.5
          %vm1976 = vcmp.gt.f32.partialorder %v1912, 0.5
          %vm1977 = vcmp.gt.f32.partialorder %v1913, 0.5
          %vm1978 = vcmp.gt.f32.partialorder %v1914, 0.5
          %vm1979 = vcmp.gt.f32.partialorder %v1915, 0.5
          %vm1980 = vcmp.gt.f32.partialorder %v1916, 0.5
          %vm1981 = vcmp.gt.f32.partialorder %v1917, 0.5
          %vm1982 = vcmp.gt.f32.partialorder %v1918, 0.5
          %vm1983 = vcmp.gt.f32.partialorder %v1919, 0.5
          %vm1984 = vcmp.gt.f32.partialorder %v1920, 0.5
          %vm1985 = vcmp.gt.f32.partialorder %v1921, 0.5
          %vm1986 = vcmp.gt.f32.partialorder %v1922, 0.5
          %vm1987 = vcmp.gt.f32.partialorder %v1923, 0.5
          %vm1988 = vcmp.gt.f32.partialorder %v1924, 0.5
          %vm1989 = vcmp.gt.f32.partialorder %v1925, 0.5
          %vm1990 = vcmp.gt.f32.partialorder %v1926, 0.5
          %vm1991 = vcmp.gt.f32.partialorder %v1927, 0.5
          %vm1992 = vcmp.gt.f32.partialorder %v1928, 0.5
          %v1993 = vld [vmem:[%s269] sm:$0xff]
          %v1994 = vld [vmem:[%s269 + $0x8] sm:$0xff]
          %v1995 = vld [vmem:[%s269 + $0x10] sm:$0xff]
          %v1996 = vld [vmem:[%s269 + $0x18] sm:$0xff]
          %v1997 = vld [vmem:[%s269 + $0x20] sm:$0xff]
          %v1998 = vld [vmem:[%s269 + $0x28] sm:$0xff]
          %v1999 = vld [vmem:[%s269 + $0x30] sm:$0xff]
          %v2000 = vld [vmem:[%s269 + $0x38] sm:$0xff]
          %v2001 = vld [vmem:[%s269 + $0x40] sm:$0xff]
          %v2002 = vld [vmem:[%s269 + $0x48] sm:$0xff]
          %v2003 = vld [vmem:[%s269 + $0x50] sm:$0xff]
          %v2004 = vld [vmem:[%s269 + $0x58] sm:$0xff]
          %v2005 = vld [vmem:[%s269 + $0x60] sm:$0xff]
          %v2006 = vld [vmem:[%s269 + $0x68] sm:$0xff]
          %v2007 = vld [vmem:[%s269 + $0x70] sm:$0xff]
          %v2008 = vld [vmem:[%s269 + $0x78] sm:$0xff]
          %v2009 = vld [vmem:[%s269 + $0x80] sm:$0xff]
          %v2010 = vld [vmem:[%s269 + $0x88] sm:$0xff]
          %v2011 = vld [vmem:[%s269 + $0x90] sm:$0xff]
          %v2012 = vld [vmem:[%s269 + $0x98] sm:$0xff]
          %v2013 = vld [vmem:[%s269 + $0xa0] sm:$0xff]
          %v2014 = vld [vmem:[%s269 + $0xa8] sm:$0xff]
          %v2015 = vld [vmem:[%s269 + $0xb0] sm:$0xff]
          %v2016 = vld [vmem:[%s269 + $0xb8] sm:$0xff]
          %v2017 = vld [vmem:[%s269 + $0xc0] sm:$0xff]
          %v2018 = vld [vmem:[%s269 + $0xc8] sm:$0xff]
          %v2019 = vld [vmem:[%s269 + $0xd0] sm:$0xff]
          %v2020 = vld [vmem:[%s269 + $0xd8] sm:$0xff]
          %v2021 = vld [vmem:[%s269 + $0xe0] sm:$0xff]
          %v2022 = vld [vmem:[%s269 + $0xe8] sm:$0xff]
          %v2023 = vld [vmem:[%s269 + $0xf0] sm:$0xff]
          %v2024 = vld [vmem:[%s269 + $0xf8] sm:$0xff]
          %v2025 = vunpack.c.l.bf16 %v1993
          %v2026 = vunpack.c.h.bf16 %v1993
          %v2027 = vunpack.c.l.bf16 %v1994
          %v2028 = vunpack.c.h.bf16 %v1994
          %v2029 = vunpack.c.l.bf16 %v1995
          %v2030 = vunpack.c.h.bf16 %v1995
          %v2031 = vunpack.c.l.bf16 %v1996
          %v2032 = vunpack.c.h.bf16 %v1996
          %v2033 = vunpack.c.l.bf16 %v1997
          %v2034 = vunpack.c.h.bf16 %v1997
          %v2035 = vunpack.c.l.bf16 %v1998
          %v2036 = vunpack.c.h.bf16 %v1998
          %v2037 = vunpack.c.l.bf16 %v1999
          %v2038 = vunpack.c.h.bf16 %v1999
          %v2039 = vunpack.c.l.bf16 %v2000
          %v2040 = vunpack.c.h.bf16 %v2000
          %v2041 = vunpack.c.l.bf16 %v2001
          %v2042 = vunpack.c.h.bf16 %v2001
          %v2043 = vunpack.c.l.bf16 %v2002
          %v2044 = vunpack.c.h.bf16 %v2002
          %v2045 = vunpack.c.l.bf16 %v2003
          %v2046 = vunpack.c.h.bf16 %v2003
          %v2047 = vunpack.c.l.bf16 %v2004
          %v2048 = vunpack.c.h.bf16 %v2004
          %v2049 = vunpack.c.l.bf16 %v2005
          %v2050 = vunpack.c.h.bf16 %v2005
          %v2051 = vunpack.c.l.bf16 %v2006
          %v2052 = vunpack.c.h.bf16 %v2006
          %v2053 = vunpack.c.l.bf16 %v2007
          %v2054 = vunpack.c.h.bf16 %v2007
          %v2055 = vunpack.c.l.bf16 %v2008
          %v2056 = vunpack.c.h.bf16 %v2008
          %v2057 = vunpack.c.l.bf16 %v2009
          %v2058 = vunpack.c.h.bf16 %v2009
          %v2059 = vunpack.c.l.bf16 %v2010
          %v2060 = vunpack.c.h.bf16 %v2010
          %v2061 = vunpack.c.l.bf16 %v2011
          %v2062 = vunpack.c.h.bf16 %v2011
          %v2063 = vunpack.c.l.bf16 %v2012
          %v2064 = vunpack.c.h.bf16 %v2012
          %v2065 = vunpack.c.l.bf16 %v2013
          %v2066 = vunpack.c.h.bf16 %v2013
          %v2067 = vunpack.c.l.bf16 %v2014
          %v2068 = vunpack.c.h.bf16 %v2014
          %v2069 = vunpack.c.l.bf16 %v2015
          %v2070 = vunpack.c.h.bf16 %v2015
          %v2071 = vunpack.c.l.bf16 %v2016
          %v2072 = vunpack.c.h.bf16 %v2016
          %v2073 = vunpack.c.l.bf16 %v2017
          %v2074 = vunpack.c.h.bf16 %v2017
          %v2075 = vunpack.c.l.bf16 %v2018
          %v2076 = vunpack.c.h.bf16 %v2018
          %v2077 = vunpack.c.l.bf16 %v2019
          %v2078 = vunpack.c.h.bf16 %v2019
          %v2079 = vunpack.c.l.bf16 %v2020
          %v2080 = vunpack.c.h.bf16 %v2020
          %v2081 = vunpack.c.l.bf16 %v2021
          %v2082 = vunpack.c.h.bf16 %v2021
          %v2083 = vunpack.c.l.bf16 %v2022
          %v2084 = vunpack.c.h.bf16 %v2022
          %v2085 = vunpack.c.l.bf16 %v2023
          %v2086 = vunpack.c.h.bf16 %v2023
          %v2087 = vunpack.c.l.bf16 %v2024
          %v2088 = vunpack.c.h.bf16 %v2024
          %vm2089 = vcmp.gt.f32.partialorder %v2025, 0.5
          %vm2090 = vcmp.gt.f32.partialorder %v2026, 0.5
          %vm2091 = vcmp.gt.f32.partialorder %v2027, 0.5
          %vm2092 = vcmp.gt.f32.partialorder %v2028, 0.5
          %vm2093 = vcmp.gt.f32.partialorder %v2029, 0.5
          %vm2094 = vcmp.gt.f32.partialorder %v2030, 0.5
          %vm2095 = vcmp.gt.f32.partialorder %v2031, 0.5
          %vm2096 = vcmp.gt.f32.partialorder %v2032, 0.5
          %vm2097 = vcmp.gt.f32.partialorder %v2033, 0.5
          %vm2098 = vcmp.gt.f32.partialorder %v2034, 0.5
          %vm2099 = vcmp.gt.f32.partialorder %v2035, 0.5
          %vm2100 = vcmp.gt.f32.partialorder %v2036, 0.5
          %vm2101 = vcmp.gt.f32.partialorder %v2037, 0.5
          %vm2102 = vcmp.gt.f32.partialorder %v2038, 0.5
          %vm2103 = vcmp.gt.f32.partialorder %v2039, 0.5
          %vm2104 = vcmp.gt.f32.partialorder %v2040, 0.5
          %vm2105 = vcmp.gt.f32.partialorder %v2041, 0.5
          %vm2106 = vcmp.gt.f32.partialorder %v2042, 0.5
          %vm2107 = vcmp.gt.f32.partialorder %v2043, 0.5
          %vm2108 = vcmp.gt.f32.partialorder %v2044, 0.5
          %vm2109 = vcmp.gt.f32.partialorder %v2045, 0.5
          %vm2110 = vcmp.gt.f32.partialorder %v2046, 0.5
          %vm2111 = vcmp.gt.f32.partialorder %v2047, 0.5
          %vm2112 = vcmp.gt.f32.partialorder %v2048, 0.5
          %vm2113 = vcmp.gt.f32.partialorder %v2049, 0.5
          %vm2114 = vcmp.gt.f32.partialorder %v2050, 0.5
          %vm2115 = vcmp.gt.f32.partialorder %v2051, 0.5
          %vm2116 = vcmp.gt.f32.partialorder %v2052, 0.5
          %vm2117 = vcmp.gt.f32.partialorder %v2053, 0.5
          %vm2118 = vcmp.gt.f32.partialorder %v2054, 0.5
          %vm2119 = vcmp.gt.f32.partialorder %v2055, 0.5
          %vm2120 = vcmp.gt.f32.partialorder %v2056, 0.5
          %vm2121 = vcmp.gt.f32.partialorder %v2057, 0.5
          %vm2122 = vcmp.gt.f32.partialorder %v2058, 0.5
          %vm2123 = vcmp.gt.f32.partialorder %v2059, 0.5
          %vm2124 = vcmp.gt.f32.partialorder %v2060, 0.5
          %vm2125 = vcmp.gt.f32.partialorder %v2061, 0.5
          %vm2126 = vcmp.gt.f32.partialorder %v2062, 0.5
          %vm2127 = vcmp.gt.f32.partialorder %v2063, 0.5
          %vm2128 = vcmp.gt.f32.partialorder %v2064, 0.5
          %vm2129 = vcmp.gt.f32.partialorder %v2065, 0.5
          %vm2130 = vcmp.gt.f32.partialorder %v2066, 0.5
          %vm2131 = vcmp.gt.f32.partialorder %v2067, 0.5
          %vm2132 = vcmp.gt.f32.partialorder %v2068, 0.5
          %vm2133 = vcmp.gt.f32.partialorder %v2069, 0.5
          %vm2134 = vcmp.gt.f32.partialorder %v2070, 0.5
          %vm2135 = vcmp.gt.f32.partialorder %v2071, 0.5
          %vm2136 = vcmp.gt.f32.partialorder %v2072, 0.5
          %vm2137 = vcmp.gt.f32.partialorder %v2073, 0.5
          %vm2138 = vcmp.gt.f32.partialorder %v2074, 0.5
          %vm2139 = vcmp.gt.f32.partialorder %v2075, 0.5
          %vm2140 = vcmp.gt.f32.partialorder %v2076, 0.5
          %vm2141 = vcmp.gt.f32.partialorder %v2077, 0.5
          %vm2142 = vcmp.gt.f32.partialorder %v2078, 0.5
          %vm2143 = vcmp.gt.f32.partialorder %v2079, 0.5
          %vm2144 = vcmp.gt.f32.partialorder %v2080, 0.5
          %vm2145 = vcmp.gt.f32.partialorder %v2081, 0.5
          %vm2146 = vcmp.gt.f32.partialorder %v2082, 0.5
          %vm2147 = vcmp.gt.f32.partialorder %v2083, 0.5
          %vm2148 = vcmp.gt.f32.partialorder %v2084, 0.5
          %vm2149 = vcmp.gt.f32.partialorder %v2085, 0.5
          %vm2150 = vcmp.gt.f32.partialorder %v2086, 0.5
          %vm2151 = vcmp.gt.f32.partialorder %v2087, 0.5
          %vm2152 = vcmp.gt.f32.partialorder %v2088, 0.5
          %vm2153 = vmxor %vm2089, 1
          %vm2154 = vmxor %vm2090, 1
          %vm2155 = vmxor %vm2091, 1
          %vm2156 = vmxor %vm2092, 1
          %vm2157 = vmxor %vm2093, 1
          %vm2158 = vmxor %vm2094, 1
          %vm2159 = vmxor %vm2095, 1
          %vm2160 = vmxor %vm2096, 1
          %vm2161 = vmxor %vm2097, 1
          %vm2162 = vmxor %vm2098, 1
          %vm2163 = vmxor %vm2099, 1
          %vm2164 = vmxor %vm2100, 1
          %vm2165 = vmxor %vm2101, 1
          %vm2166 = vmxor %vm2102, 1
          %vm2167 = vmxor %vm2103, 1
          %vm2168 = vmxor %vm2104, 1
          %vm2169 = vmxor %vm2105, 1
          %vm2170 = vmxor %vm2106, 1
          %vm2171 = vmxor %vm2107, 1
          %vm2172 = vmxor %vm2108, 1
          %vm2173 = vmxor %vm2109, 1
          %vm2174 = vmxor %vm2110, 1
          %vm2175 = vmxor %vm2111, 1
          %vm2176 = vmxor %vm2112, 1
          %vm2177 = vmxor %vm2113, 1
          %vm2178 = vmxor %vm2114, 1
          %vm2179 = vmxor %vm2115, 1
          %vm2180 = vmxor %vm2116, 1
          %vm2181 = vmxor %vm2117, 1
          %vm2182 = vmxor %vm2118, 1
          %vm2183 = vmxor %vm2119, 1
          %vm2184 = vmxor %vm2120, 1
          %vm2185 = vmxor %vm2121, 1
          %vm2186 = vmxor %vm2122, 1
          %vm2187 = vmxor %vm2123, 1
          %vm2188 = vmxor %vm2124, 1
          %vm2189 = vmxor %vm2125, 1
          %vm2190 = vmxor %vm2126, 1
          %vm2191 = vmxor %vm2127, 1
          %vm2192 = vmxor %vm2128, 1
          %vm2193 = vmxor %vm2129, 1
          %vm2194 = vmxor %vm2130, 1
          %vm2195 = vmxor %vm2131, 1
          %vm2196 = vmxor %vm2132, 1
          %vm2197 = vmxor %vm2133, 1
          %vm2198 = vmxor %vm2134, 1
          %vm2199 = vmxor %vm2135, 1
          %vm2200 = vmxor %vm2136, 1
          %vm2201 = vmxor %vm2137, 1
          %vm2202 = vmxor %vm2138, 1
          %vm2203 = vmxor %vm2139, 1
          %vm2204 = vmxor %vm2140, 1
          %vm2205 = vmxor %vm2141, 1
          %vm2206 = vmxor %vm2142, 1
          %vm2207 = vmxor %vm2143, 1
          %vm2208 = vmxor %vm2144, 1
          %vm2209 = vmxor %vm2145, 1
          %vm2210 = vmxor %vm2146, 1
          %vm2211 = vmxor %vm2147, 1
          %vm2212 = vmxor %vm2148, 1
          %vm2213 = vmxor %vm2149, 1
          %vm2214 = vmxor %vm2150, 1
          %vm2215 = vmxor %vm2151, 1
          %vm2216 = vmxor %vm2152, 1
          %vm2217 = vmand %vm1929, %vm2153
          %vm2218 = vmand %vm1930, %vm2154
          %vm2219 = vmand %vm1931, %vm2155
          %vm2220 = vmand %vm1932, %vm2156
          %vm2221 = vmand %vm1933, %vm2157
          %vm2222 = vmand %vm1934, %vm2158
          %vm2223 = vmand %vm1935, %vm2159
          %vm2224 = vmand %vm1936, %vm2160
          %vm2225 = vmand %vm1937, %vm2161
          %vm2226 = vmand %vm1938, %vm2162
          %vm2227 = vmand %vm1939, %vm2163
          %vm2228 = vmand %vm1940, %vm2164
          %vm2229 = vmand %vm1941, %vm2165
          %vm2230 = vmand %vm1942, %vm2166
          %vm2231 = vmand %vm1943, %vm2167
          %vm2232 = vmand %vm1944, %vm2168
          %vm2233 = vmand %vm1945, %vm2169
          %vm2234 = vmand %vm1946, %vm2170
          %vm2235 = vmand %vm1947, %vm2171
          %vm2236 = vmand %vm1948, %vm2172
          %vm2237 = vmand %vm1949, %vm2173
          %vm2238 = vmand %vm1950, %vm2174
          %vm2239 = vmand %vm1951, %vm2175
          %vm2240 = vmand %vm1952, %vm2176
          %vm2241 = vmand %vm1953, %vm2177
          %vm2242 = vmand %vm1954, %vm2178
          %vm2243 = vmand %vm1955, %vm2179
          %vm2244 = vmand %vm1956, %vm2180
          %vm2245 = vmand %vm1957, %vm2181
          %vm2246 = vmand %vm1958, %vm2182
          %vm2247 = vmand %vm1959, %vm2183
          %vm2248 = vmand %vm1960, %vm2184
          %vm2249 = vmand %vm1961, %vm2185
          %vm2250 = vmand %vm1962, %vm2186
          %vm2251 = vmand %vm1963, %vm2187
          %vm2252 = vmand %vm1964, %vm2188
          %vm2253 = vmand %vm1965, %vm2189
          %vm2254 = vmand %vm1966, %vm2190
          %vm2255 = vmand %vm1967, %vm2191
          %vm2256 = vmand %vm1968, %vm2192
          %vm2257 = vmand %vm1969, %vm2193
          %vm2258 = vmand %vm1970, %vm2194
          %vm2259 = vmand %vm1971, %vm2195
          %vm2260 = vmand %vm1972, %vm2196
          %vm2261 = vmand %vm1973, %vm2197
          %vm2262 = vmand %vm1974, %vm2198
          %vm2263 = vmand %vm1975, %vm2199
          %vm2264 = vmand %vm1976, %vm2200
          %vm2265 = vmand %vm1977, %vm2201
          %vm2266 = vmand %vm1978, %vm2202
          %vm2267 = vmand %vm1979, %vm2203
          %vm2268 = vmand %vm1980, %vm2204
          %vm2269 = vmand %vm1981, %vm2205
          %vm2270 = vmand %vm1982, %vm2206
          %vm2271 = vmand %vm1983, %vm2207
          %vm2272 = vmand %vm1984, %vm2208
          %vm2273 = vmand %vm1985, %vm2209
          %vm2274 = vmand %vm1986, %vm2210
          %vm2275 = vmand %vm1987, %vm2211
          %vm2276 = vmand %vm1988, %vm2212
          %vm2277 = vmand %vm1989, %vm2213
          %vm2278 = vmand %vm1990, %vm2214
          %vm2279 = vmand %vm1991, %vm2215
          %vm2280 = vmand %vm1992, %vm2216
          %vm2281 = vmand %vm2217, %vm1798
          %vm2282 = vmand %vm2218, %vm1799
          %vm2283 = vmand %vm2219, %vm1800
          %vm2284 = vmand %vm2220, %vm1801
          %vm2285 = vmand %vm2221, %vm1802
          %vm2286 = vmand %vm2222, %vm1803
          %vm2287 = vmand %vm2223, %vm1804
          %vm2288 = vmand %vm2224, %vm1805
          %vm2289 = vmand %vm2225, %vm1806
          %vm2290 = vmand %vm2226, %vm1807
          %vm2291 = vmand %vm2227, %vm1808
          %vm2292 = vmand %vm2228, %vm1809
          %vm2293 = vmand %vm2229, %vm1810
          %vm2294 = vmand %vm2230, %vm1811
          %vm2295 = vmand %vm2231, %vm1812
          %vm2296 = vmand %vm2232, %vm1813
          %vm2297 = vmand %vm2233, %vm1814
          %vm2298 = vmand %vm2234, %vm1815
          %vm2299 = vmand %vm2235, %vm1816
          %vm2300 = vmand %vm2236, %vm1817
          %vm2301 = vmand %vm2237, %vm1818
          %vm2302 = vmand %vm2238, %vm1819
          %vm2303 = vmand %vm2239, %vm1820
          %vm2304 = vmand %vm2240, %vm1821
          %vm2305 = vmand %vm2241, %vm1822
          %vm2306 = vmand %vm2242, %vm1823
          %vm2307 = vmand %vm2243, %vm1824
          %vm2308 = vmand %vm2244, %vm1825
          %vm2309 = vmand %vm2245, %vm1826
          %vm2310 = vmand %vm2246, %vm1827
          %vm2311 = vmand %vm2247, %vm1828
          %vm2312 = vmand %vm2248, %vm1829
          %vm2313 = vmand %vm2249, %vm1830
          %vm2314 = vmand %vm2250, %vm1831
          %vm2315 = vmand %vm2251, %vm1832
          %vm2316 = vmand %vm2252, %vm1833
          %vm2317 = vmand %vm2253, %vm1834
          %vm2318 = vmand %vm2254, %vm1835
          %vm2319 = vmand %vm2255, %vm1836
          %vm2320 = vmand %vm2256, %vm1837
          %vm2321 = vmand %vm2257, %vm1838
          %vm2322 = vmand %vm2258, %vm1839
          %vm2323 = vmand %vm2259, %vm1840
          %vm2324 = vmand %vm2260, %vm1841
          %vm2325 = vmand %vm2261, %vm1842
          %vm2326 = vmand %vm2262, %vm1843
          %vm2327 = vmand %vm2263, %vm1844
          %vm2328 = vmand %vm2264, %vm1845
          %vm2329 = vmand %vm2265, %vm1846
          %vm2330 = vmand %vm2266, %vm1847
          %vm2331 = vmand %vm2267, %vm1848
          %vm2332 = vmand %vm2268, %vm1849
          %vm2333 = vmand %vm2269, %vm1850
          %vm2334 = vmand %vm2270, %vm1851
          %vm2335 = vmand %vm2271, %vm1852
          %vm2336 = vmand %vm2272, %vm1853
          %vm2337 = vmand %vm2273, %vm1854
          %vm2338 = vmand %vm2274, %vm1855
          %vm2339 = vmand %vm2275, %vm1856
          %vm2340 = vmand %vm2276, %vm1857
          %vm2341 = vmand %vm2277, %vm1858
          %vm2342 = vmand %vm2278, %vm1859
          %vm2343 = vmand %vm2279, %vm1860
          %vm2344 = vmand %vm2280, %vm1861
          %v2345 = vsel %vm2281, 1.0, 0.0
          %v2346 = vsel %vm2282, 1.0, 0.0
          %v2347 = vsel %vm2283, 1.0, 0.0
          %v2348 = vsel %vm2284, 1.0, 0.0
          %v2349 = vsel %vm2285, 1.0, 0.0
          %v2350 = vsel %vm2286, 1.0, 0.0
          %v2351 = vsel %vm2287, 1.0, 0.0
          %v2352 = vsel %vm2288, 1.0, 0.0
          %v2353 = vsel %vm2289, 1.0, 0.0
          %v2354 = vsel %vm2290, 1.0, 0.0
          %v2355 = vsel %vm2291, 1.0, 0.0
          %v2356 = vsel %vm2292, 1.0, 0.0
          %v2357 = vsel %vm2293, 1.0, 0.0
          %v2358 = vsel %vm2294, 1.0, 0.0
          %v2359 = vsel %vm2295, 1.0, 0.0
          %v2360 = vsel %vm2296, 1.0, 0.0
          %v2361 = vsel %vm2297, 1.0, 0.0
          %v2362 = vsel %vm2298, 1.0, 0.0
          %v2363 = vsel %vm2299, 1.0, 0.0
          %v2364 = vsel %vm2300, 1.0, 0.0
          %v2365 = vsel %vm2301, 1.0, 0.0
          %v2366 = vsel %vm2302, 1.0, 0.0
          %v2367 = vsel %vm2303, 1.0, 0.0
          %v2368 = vsel %vm2304, 1.0, 0.0
          %v2369 = vsel %vm2305, 1.0, 0.0
          %v2370 = vsel %vm2306, 1.0, 0.0
          %v2371 = vsel %vm2307, 1.0, 0.0
          %v2372 = vsel %vm2308, 1.0, 0.0
          %v2373 = vsel %vm2309, 1.0, 0.0
          %v2374 = vsel %vm2310, 1.0, 0.0
          %v2375 = vsel %vm2311, 1.0, 0.0
          %v2376 = vsel %vm2312, 1.0, 0.0
          %v2377 = vsel %vm2313, 1.0, 0.0
          %v2378 = vsel %vm2314, 1.0, 0.0
          %v2379 = vsel %vm2315, 1.0, 0.0
          %v2380 = vsel %vm2316, 1.0, 0.0
          %v2381 = vsel %vm2317, 1.0, 0.0
          %v2382 = vsel %vm2318, 1.0, 0.0
          %v2383 = vsel %vm2319, 1.0, 0.0
          %v2384 = vsel %vm2320, 1.0, 0.0
          %v2385 = vsel %vm2321, 1.0, 0.0
          %v2386 = vsel %vm2322, 1.0, 0.0
          %v2387 = vsel %vm2323, 1.0, 0.0
          %v2388 = vsel %vm2324, 1.0, 0.0
          %v2389 = vsel %vm2325, 1.0, 0.0
          %v2390 = vsel %vm2326, 1.0, 0.0
          %v2391 = vsel %vm2327, 1.0, 0.0
          %v2392 = vsel %vm2328, 1.0, 0.0
          %v2393 = vsel %vm2329, 1.0, 0.0
          %v2394 = vsel %vm2330, 1.0, 0.0
          %v2395 = vsel %vm2331, 1.0, 0.0
          %v2396 = vsel %vm2332, 1.0, 0.0
          %v2397 = vsel %vm2333, 1.0, 0.0
          %v2398 = vsel %vm2334, 1.0, 0.0
          %v2399 = vsel %vm2335, 1.0, 0.0
          %v2400 = vsel %vm2336, 1.0, 0.0
          %v2401 = vsel %vm2337, 1.0, 0.0
          %v2402 = vsel %vm2338, 1.0, 0.0
          %v2403 = vsel %vm2339, 1.0, 0.0
          %v2404 = vsel %vm2340, 1.0, 0.0
          %v2405 = vsel %vm2341, 1.0, 0.0
          %v2406 = vsel %vm2342, 1.0, 0.0
          %v2407 = vsel %vm2343, 1.0, 0.0
          %v2408 = vsel %vm2344, 1.0, 0.0
          %v2409 = vpack.c.bf16 %v2347, %v2345
          %v2410 = vpack.c.bf16 %v2348, %v2346
          %v2411 = vpack.c.bf16 %v2351, %v2349
          %v2412 = vpack.c.bf16 %v2352, %v2350
          %v2413 = vpack.c.bf16 %v2355, %v2353
          %v2414 = vpack.c.bf16 %v2356, %v2354
          %v2415 = vpack.c.bf16 %v2359, %v2357
          %v2416 = vpack.c.bf16 %v2360, %v2358
          %v2417 = vpack.c.bf16 %v2363, %v2361
          %v2418 = vpack.c.bf16 %v2364, %v2362
          %v2419 = vpack.c.bf16 %v2367, %v2365
          %v2420 = vpack.c.bf16 %v2368, %v2366
          %v2421 = vpack.c.bf16 %v2371, %v2369
          %v2422 = vpack.c.bf16 %v2372, %v2370
          %v2423 = vpack.c.bf16 %v2375, %v2373
          %v2424 = vpack.c.bf16 %v2376, %v2374
          %v2425 = vpack.c.bf16 %v2379, %v2377
          %v2426 = vpack.c.bf16 %v2380, %v2378
          %v2427 = vpack.c.bf16 %v2383, %v2381
          %v2428 = vpack.c.bf16 %v2384, %v2382
          %v2429 = vpack.c.bf16 %v2387, %v2385
          %v2430 = vpack.c.bf16 %v2388, %v2386
          %v2431 = vpack.c.bf16 %v2391, %v2389
          %v2432 = vpack.c.bf16 %v2392, %v2390
          %v2433 = vpack.c.bf16 %v2395, %v2393
          %v2434 = vpack.c.bf16 %v2396, %v2394
          %v2435 = vpack.c.bf16 %v2399, %v2397
          %v2436 = vpack.c.bf16 %v2400, %v2398
          %v2437 = vpack.c.bf16 %v2403, %v2401
          %v2438 = vpack.c.bf16 %v2404, %v2402
          %v2439 = vpack.c.bf16 %v2407, %v2405
          %v2440 = vpack.c.bf16 %v2408, %v2406
          %v2473 = vunpack.c.l.b16 %v2409
          %v2474 = vunpack.c.l.b16 %v2410
          %v2475 = vunpack.c.h.b16 %v2409
          %v2476 = vunpack.c.h.b16 %v2410
          %v2477 = vunpack.c.l.b16 %v2411
          %v2478 = vunpack.c.l.b16 %v2412
          %v2479 = vunpack.c.h.b16 %v2411
          %v2480 = vunpack.c.h.b16 %v2412
          %v2481 = vunpack.c.l.b16 %v2413
          %v2482 = vunpack.c.l.b16 %v2414
          %v2483 = vunpack.c.h.b16 %v2413
          %v2484 = vunpack.c.h.b16 %v2414
          %v2485 = vunpack.c.l.b16 %v2415
          %v2486 = vunpack.c.l.b16 %v2416
          %v2487 = vunpack.c.h.b16 %v2415
          %v2488 = vunpack.c.h.b16 %v2416
          %v2489 = vunpack.c.l.b16 %v2417
          %v2490 = vunpack.c.l.b16 %v2418
          %v2491 = vunpack.c.h.b16 %v2417
          %v2492 = vunpack.c.h.b16 %v2418
          %v2493 = vunpack.c.l.b16 %v2419
          %v2494 = vunpack.c.l.b16 %v2420
          %v2495 = vunpack.c.h.b16 %v2419
          %v2496 = vunpack.c.h.b16 %v2420
          %v2497 = vunpack.c.l.b16 %v2421
          %v2498 = vunpack.c.l.b16 %v2422
          %v2499 = vunpack.c.h.b16 %v2421
          %v2500 = vunpack.c.h.b16 %v2422
          %v2501 = vunpack.c.l.b16 %v2423
          %v2502 = vunpack.c.l.b16 %v2424
          %v2503 = vunpack.c.h.b16 %v2423
          %v2504 = vunpack.c.h.b16 %v2424
          %v2505 = vunpack.c.l.b16 %v2425
          %v2506 = vunpack.c.l.b16 %v2426
          %v2507 = vunpack.c.h.b16 %v2425
          %v2508 = vunpack.c.h.b16 %v2426
          %v2509 = vunpack.c.l.b16 %v2427
          %v2510 = vunpack.c.l.b16 %v2428
          %v2511 = vunpack.c.h.b16 %v2427
          %v2512 = vunpack.c.h.b16 %v2428
          %v2513 = vunpack.c.l.b16 %v2429
          %v2514 = vunpack.c.l.b16 %v2430
          %v2515 = vunpack.c.h.b16 %v2429
          %v2516 = vunpack.c.h.b16 %v2430
          %v2517 = vunpack.c.l.b16 %v2431
          %v2518 = vunpack.c.l.b16 %v2432
          %v2519 = vunpack.c.h.b16 %v2431
          %v2520 = vunpack.c.h.b16 %v2432
          %v2521 = vunpack.c.l.b16 %v2433
          %v2522 = vunpack.c.l.b16 %v2434
          %v2523 = vunpack.c.h.b16 %v2433
          %v2524 = vunpack.c.h.b16 %v2434
          %v2525 = vunpack.c.l.b16 %v2435
          %v2526 = vunpack.c.l.b16 %v2436
          %v2527 = vunpack.c.h.b16 %v2435
          %v2528 = vunpack.c.h.b16 %v2436
          %v2529 = vunpack.c.l.b16 %v2437
          %v2530 = vunpack.c.l.b16 %v2438
          %v2531 = vunpack.c.h.b16 %v2437
          %v2532 = vunpack.c.h.b16 %v2438
          %v2533 = vunpack.c.l.b16 %v2439
          %v2534 = vunpack.c.l.b16 %v2440
          %v2535 = vunpack.c.h.b16 %v2439
          %v2536 = vunpack.c.h.b16 %v2440
          %v2537 = vpack.c.b16 %v2474, %v2473
          %v2538 = vpack.c.b16 %v2476, %v2475
          %v2539 = vpack.c.b16 %v2478, %v2477
          %v2540 = vpack.c.b16 %v2480, %v2479
          %v2541 = vpack.c.b16 %v2482, %v2481
          %v2542 = vpack.c.b16 %v2484, %v2483
          %v2543 = vpack.c.b16 %v2486, %v2485
          %v2544 = vpack.c.b16 %v2488, %v2487
          %v2545 = vpack.c.b16 %v2490, %v2489
          %v2546 = vpack.c.b16 %v2492, %v2491
          %v2547 = vpack.c.b16 %v2494, %v2493
          %v2548 = vpack.c.b16 %v2496, %v2495
          %v2549 = vpack.c.b16 %v2498, %v2497
          %v2550 = vpack.c.b16 %v2500, %v2499
          %v2551 = vpack.c.b16 %v2502, %v2501
          %v2552 = vpack.c.b16 %v2504, %v2503
          %v2553 = vpack.c.b16 %v2506, %v2505
          %v2554 = vpack.c.b16 %v2508, %v2507
          %v2555 = vpack.c.b16 %v2510, %v2509
          %v2556 = vpack.c.b16 %v2512, %v2511
          %v2557 = vpack.c.b16 %v2514, %v2513
          %v2558 = vpack.c.b16 %v2516, %v2515
          %v2559 = vpack.c.b16 %v2518, %v2517
          %v2560 = vpack.c.b16 %v2520, %v2519
          %v2561 = vpack.c.b16 %v2522, %v2521
          %v2562 = vpack.c.b16 %v2524, %v2523
          %v2563 = vpack.c.b16 %v2526, %v2525
          %v2564 = vpack.c.b16 %v2528, %v2527
          %v2565 = vpack.c.b16 %v2530, %v2529
          %v2566 = vpack.c.b16 %v2532, %v2531
          %v2567 = vpack.c.b16 %v2534, %v2533
          %v2568 = vpack.c.b16 %v2536, %v2535
          %2601 = vst [vmem:[%s301] sm:$0xff] %v2537
          %2602 = vst [vmem:[%s301 + $0x8] sm:$0xff] %v2538
          %2603 = vst [vmem:[%s301 + $0x10] sm:$0xff] %v2539
          %2604 = vst [vmem:[%s301 + $0x18] sm:$0xff] %v2540
          %2605 = vst [vmem:[%s301 + $0x20] sm:$0xff] %v2541
          %2606 = vst [vmem:[%s301 + $0x28] sm:$0xff] %v2542
          %2607 = vst [vmem:[%s301 + $0x30] sm:$0xff] %v2543
          %2608 = vst [vmem:[%s301 + $0x38] sm:$0xff] %v2544
          %2609 = vst [vmem:[%s301 + $0x40] sm:$0xff] %v2545
          %2610 = vst [vmem:[%s301 + $0x48] sm:$0xff] %v2546
          %2611 = vst [vmem:[%s301 + $0x50] sm:$0xff] %v2547
          %2612 = vst [vmem:[%s301 + $0x58] sm:$0xff] %v2548
          %2613 = vst [vmem:[%s301 + $0x60] sm:$0xff] %v2549
          %2614 = vst [vmem:[%s301 + $0x68] sm:$0xff] %v2550
          %2615 = vst [vmem:[%s301 + $0x70] sm:$0xff] %v2551
          %2616 = vst [vmem:[%s301 + $0x78] sm:$0xff] %v2552
          %2617 = vst [vmem:[%s301 + $0x80] sm:$0xff] %v2553
          %2618 = vst [vmem:[%s301 + $0x88] sm:$0xff] %v2554
          %2619 = vst [vmem:[%s301 + $0x90] sm:$0xff] %v2555
          %2620 = vst [vmem:[%s301 + $0x98] sm:$0xff] %v2556
          %2621 = vst [vmem:[%s301 + $0xa0] sm:$0xff] %v2557
          %2622 = vst [vmem:[%s301 + $0xa8] sm:$0xff] %v2558
          %2623 = vst [vmem:[%s301 + $0xb0] sm:$0xff] %v2559
          %2624 = vst [vmem:[%s301 + $0xb8] sm:$0xff] %v2560
          %2625 = vst [vmem:[%s301 + $0xc0] sm:$0xff] %v2561
          %2626 = vst [vmem:[%s301 + $0xc8] sm:$0xff] %v2562
          %2627 = vst [vmem:[%s301 + $0xd0] sm:$0xff] %v2563
          %2628 = vst [vmem:[%s301 + $0xd8] sm:$0xff] %v2564
          %2629 = vst [vmem:[%s301 + $0xe0] sm:$0xff] %v2565
          %2630 = vst [vmem:[%s301 + $0xe8] sm:$0xff] %v2566
          %2631 = vst [vmem:[%s301 + $0xf0] sm:$0xff] %v2567
          %2632 = vst [vmem:[%s301 + $0xf8] sm:$0xff] %v2568
        $region52: #{tpu_custom_call.1} parent=31 // pred_fallthru
          _
        %s2633 = sand.u32 %s136, 1
        %s2634 = scalar_lea.sflag [#allocation5], %s2633
        %s2635 = sand.u32 %s136, 1
        %s2636 = smul.addr %s2635, 256
        %s2637 = scalar_lea.vmem [#allocation9], %s2636
        // Predicated region
        $region53: #{tpu_custom_call.1} parent=31 // pred_check
          %p2638 = pneg %p146
        $region54: #{tpu_custom_call.1} parent=31 // pred_check_branch
          %2640 = sbr.rel (%p2638) target = $region56
        $region55: #{tpu_custom_call.1} parent=31 // pred_region
          %s2641 = smul.u32 32, %s28
          %s2642 = smul.u32 2, %s29
          %s2644 = ssub.s32 4096, 4096
          %2645 = vsyncadd %s2634, %s2644
          %s2646 = smul.addr %s2641, 4
          %s2647 = sadd.s32 %s2642, %s2646
          %s2648 = smul.addr %s2647, 64
          %s2649 = scalar_lea.hbm %s3, %s2648
          %s2650 = sshll.u32 %s2637, 4
          %s2651 = int_to_ptr.vmem [resolvable:$true] %s2650
          %2656 = dma.vmem_to_hbm [thread:$0]  %s2651, 4096, %s2649, %s2634, 128, 256, 8
        $region56: #{tpu_custom_call.1} parent=31 // pred_fallthru
          _
      $region32: #{tpu_custom_call.1} parent=5 // pred_fallthru
        _
      %p2657 = scmp.le.s32.totalorder 2, %s18
      // Predicated region
      $region57: #{tpu_custom_call.1} parent=5 // pred_check
        %p2658 = pneg %p2657
      $region58: #{tpu_custom_call.1} parent=5 // pred_check_branch
        %2660 = sbr.rel (%p2658) target = $region60
      $region59: #{tpu_custom_call.1} parent=5 // pred_region
        %s2661 = ssub.s32 %s18, 2
        // Predicated region
        $region61: #{tpu_custom_call.1} parent=59 // pred_check
          %p2662 = pneg %p152
        $region62: #{tpu_custom_call.1} parent=59 // pred_check_branch
          %2664 = sbr.rel (%p2662) target = $region64
        $region63: #{tpu_custom_call.1} parent=59 // pred_region
          %s2665 = sand.u32 %s137, 1
          %s2666 = scalar_lea.sflag [#allocation5], %s2665
          %s2667 = sand.u32 %s137, 1
          %s2668 = smul.addr %s2667, 256
          %s2669 = scalar_lea.vmem [#allocation9], %s2668
          %2670 = dma.done %s2666, 4096
        $region64: #{tpu_custom_call.1} parent=59 // pred_fallthru
          _
      $region60: #{tpu_custom_call.1} parent=5 // pred_fallthru
        _
    $region6: #{tpu_custom_call.1} parent=1 // loop_footer
      %s22 = sadd.s32 1, %s18
    $region7: #{tpu_custom_call.1} parent=1 // loop_footer_branch
      %17 = sbr.rel target = $region3
    $region8: #{tpu_custom_call.1} parent=1 // loop_exit
      _
    %2671 = vsyncpa [#allocation4], 1
    %s2672 = scalar_lea.sflag [#allocation4], 1
    %2673 = vsyncpa %s2672, 1
    %2674 = vsyncpa [#allocation7], 1
    %s2675 = scalar_lea.sflag [#allocation7], 1
    %2676 = vsyncpa %s2675, 1
    %2677 = vsyncpa [#allocation5], 1
    %s2678 = scalar_lea.sflag [#allocation5], 1
    %2679 = vsyncpa %s2678, 1

</llo_original>
